<compile_context>
chip_gen: v7x
topology: tpu7x:2x2x1
jax: 0.10.0
libtpu: 0.0.40
codegen_flags: <defaults>
</compile_context>

<pallas_src>
import jax
import jax.numpy as jnp
from jax.experimental import pallas as pl
from jax.experimental.pallas import tpu as pltpu

EPS = 1e-5


# ----------------------------- fused Pallas kernel ---------------------------
def ginp_fused_kernel(A_ref, h0_ref, bemb_ref,
                      W1_ref, b1_ref, W2_ref, b2_ref,
                      gamma_ref, beta_ref, rmean_ref, rvar_ref,
                      semb_ref, Ww_ref, bw_ref, P_ref, Wp_ref, bp_ref,
                      h_out_ref, head_ref, nf_scr):
    """One grid step = one GIN layer; readout + predict fused into the last step.

    h_out_ref (constant block index) doubles as the VMEM-resident layer carry.
    """
    l = pl.program_id(0)
    n_layers = pl.num_programs(0)

    @pl.when(l == 0)
    def _():
        # Seed the carry, precompute the layer-independent w(smodel_embed) term,
        # and initialize the head output block.
        h_out_ref[...] = h0_ref[...]
        nf_scr[...] = (jnp.dot(semb_ref[...], Ww_ref[...],
                               preferred_element_type=jnp.float32) + bw_ref[...])
        head_ref[...] = jnp.zeros_like(head_ref)

    h = h_out_ref[...]                                   # f32 carry
    # GIN aggregation: A @ h  +  (precomputed per-layer edge-embedding sum).
    agg = (jnp.dot(A_ref[...], h.astype(jnp.bfloat16),
                   preferred_element_type=jnp.float32) + bemb_ref[0])
    # MLP: Linear(D, 2D) -> ReLU -> Linear(2D, D)   (bf16 MXU operands, f32 acc)
    z = jnp.maximum(
        jnp.dot(agg.astype(jnp.bfloat16), W1_ref[0],
                preferred_element_type=jnp.float32) + b1_ref[0], 0.0)
    z = (jnp.dot(z.astype(jnp.bfloat16), W2_ref[0],
                 preferred_element_type=jnp.float32) + b2_ref[0])
    # BatchNorm1d (eval mode, running statistics) -- f32 VPU epilogue.
    z = (z - rmean_ref[0]) * jax.lax.rsqrt(rvar_ref[0] + EPS) * gamma_ref[0] + beta_ref[0]

    # Outer ReLU on all but the last layer; dropout is identity (eval mode).
    @pl.when(l < n_layers - 1)
    def _():
        h_out_ref[...] = jnp.maximum(z, 0.0)

    @pl.when(l == n_layers - 1)
    def _():
        h_out_ref[...] = z
        # node_feats + w(smodel_embed) -> mean readout -> predict linear
        h_final = z + nf_scr[...]
        g = jnp.dot(P_ref[...], h_final, preferred_element_type=jnp.float32)
        head_ref[...] = (jnp.dot(g, Wp_ref[...],
                                 preferred_element_type=jnp.float32) + bp_ref[...])


# ----------------------------- wrapper ---------------------------------------
def run_ginp(A, h0, Bemb_all, W1_all, b1_all, W2_all, b2_all,
             gamma_all, beta_all, rmean_all, rvar_all,
             semb, Ww, bw, P, Wp, bp):
    """All inputs are pre-padded (lane-dense last dims) and pre-cast."""
    L, N, Dp = Bemb_all.shape
    Hp = W1_all.shape[-1]
    S = semb.shape[-1]
    Gp = P.shape[0]
    Tp = Wp.shape[-1]

    def const(shape):
        return pl.BlockSpec(shape, lambda l: (0, 0))

    def per_layer(shape):
        return pl.BlockSpec((1,) + shape, lambda l: (l, 0, 0))

    grid_spec = pltpu.PrefetchScalarGridSpec(
        num_scalar_prefetch=0,
        grid=(L,),
        in_specs=[
            const((N, N)),          # A                (bf16)
            const((N, Dp)),         # h0               (f32)
            per_layer((N, Dp)),     # Bemb_l = B @ eemb_l   (f32)
            per_layer((Dp, Hp)),    # W1               (bf16)
            per_layer((1, Hp)),     # b1
            per_layer((Hp, Dp)),    # W2               (bf16)
            per_layer((1, Dp)),     # b2
            per_layer((1, Dp)),     # bn gamma
            per_layer((1, Dp)),     # bn beta
            per_layer((1, Dp)),     # bn running_mean
            per_layer((1, Dp)),     # bn running_var
            const((N, S)),          # smodel embedding (bf16)
            const((S, Dp)),         # Ww               (bf16)
            const((1, Dp)),         # bw
            const((Gp, N)),         # mean-pool matrix
            const((Dp, Tp)),        # Wp
            const((1, Tp)),         # bp
        ],
        out_specs=[
            pl.BlockSpec((N, Dp), lambda l: (0, 0)),     # node feats (= layer carry)
            pl.BlockSpec((Gp, Tp), lambda l: (0, 0)),    # head output
        ],
        scratch_shapes=[pltpu.VMEM((N, Dp), jnp.float32)],   # nf = semb @ Ww + bw
    )
    return pl.pallas_call(
        ginp_fused_kernel,
        out_shape=(jax.ShapeDtypeStruct((N, Dp), jnp.float32),
                   jax.ShapeDtypeStruct((Gp, Tp), jnp.float32)),
        grid_spec=grid_spec,
        compiler_params=pltpu.CompilerParams(
            dimension_semantics=("arbitrary",),
            vmem_limit_bytes=64 * 1024 * 1024),
    )(A, h0, Bemb_all, W1_all, b1_all, W2_all, b2_all,
      gamma_all, beta_all, rmean_all, rvar_all,
      semb, Ww, bw, P, Wp, bp)


# ----------------------------- pure-JAX reference -----------------------------
def reference(A, B, h0, eemb_all, W1, b1, W2, b2, gamma, beta, rmean, rvar,
              semb, Ww, bw, P, Wp, bp):
    h = h0
    L = eemb_all.shape[0]
    for l in range(L):
        agg = A @ h + B @ eemb_all[l]
        z = jnp.maximum(agg @ W1[l] + b1[l], 0.0)
        z = z @ W2[l] + b2[l]
        z = (z - rmean[l]) / jnp.sqrt(rvar[l] + EPS) * gamma[l] + beta[l]
        if l < L - 1:
            z = jnp.maximum(z, 0.0)
        h = z
    h = h + (semb @ Ww + bw)
    return (P @ h) @ Wp + bp


# ----------------------------- helpers ----------------------------------------
def pad_last(x, sizes):
    """Zero-pad the trailing len(sizes) dims of x up to the given sizes."""
    widths = [(0, 0)] * (x.ndim - len(sizes))
    widths += [(0, s - d) for d, s in zip(x.shape[x.ndim - len(sizes):], sizes)]
    return jnp.pad(x, widths)


# ----------------------------- main --------------------------------------------
if __name__ == "__main__":
    key = jax.random.PRNGKey(0)

    # Hyperparameters (shrunk from the module defaults emb_dim=300, num_layers=5)
    num_node_emb_list = [5, 3]
    num_edge_emb_list = [4, 2]
    num_layers = 3
    emb_dim = 32
    hidden = 2 * emb_dim
    s_emb_dim = 256
    n_tasks = 1

    # Lane-dense padded sizes
    Dp = 128            # emb_dim   32 -> 128
    Hp = 128            # hidden    64 -> 128
    Tp = 128            # n_tasks    1 -> 128
    Gp = 8              # graphs     2 -> 8 (sublane)

    # --- small batched graph: 2 directed ring graphs of 8 nodes each ----------
    n_per_graph, n_graphs = 8, 2
    N = n_per_graph * n_graphs
    src_list, dst_list, gid_list = [], [], []
    for g in range(n_graphs):
        base = g * n_per_graph
        for i in range(n_per_graph):
            a, b = base + i, base + (i + 1) % n_per_graph
            src_list += [a, b]
            dst_list += [b, a]
        gid_list += [g] * n_per_graph
    src = jnp.array(src_list, jnp.int32)
    dst = jnp.array(dst_list, jnp.int32)
    graph_id = jnp.array(gid_list, jnp.int32)
    E = src.shape[0]

    A = jnp.zeros((N, N), jnp.float32).at[dst, src].add(1.0)               # (N, N)
    B = jnp.zeros((N, E), jnp.float32).at[dst, jnp.arange(E)].set(1.0)     # (N, E)
    counts = jnp.zeros((n_graphs,), jnp.float32).at[graph_id].add(1.0)
    P = (jax.nn.one_hot(graph_id, n_graphs, dtype=jnp.float32).T
         / counts[:, None])                                                # (G, N) mean pool

    # --- categorical features --------------------------------------------------
    keys = iter(jax.random.split(key, 64))
    cat_node_feats = [jax.random.randint(next(keys), (N,), 0, n, jnp.int32)
                      for n in num_node_emb_list]
    cat_edge_feats = [jax.random.randint(next(keys), (E,), 0, n, jnp.int32)
                      for n in num_edge_emb_list]

    def rnd(shape, scale=0.1):
        return scale * jax.random.normal(next(keys), shape, jnp.float32)

    # node embedding tables (summed lookup -> h0), plain JAX (gather glue)
    node_tables = [rnd((n, emb_dim)) for n in num_node_emb_list]
    h0 = sum(tbl[idx] for tbl, idx in zip(node_tables, cat_node_feats))     # (N, D)

    # per-layer edge embedding tables -> per-layer summed edge embeddings
    eemb_all = jnp.stack([
        sum(rnd((n, emb_dim))[idx] for n, idx in zip(num_edge_emb_list, cat_edge_feats))
        for _ in range(num_layers)
    ])                                                                      # (L, E, D)

    # per-layer MLP weights (stored pre-transposed: x @ W)
    W1_all = jnp.stack([rnd((emb_dim, hidden)) for _ in range(num_layers)])
    b1_all = jnp.stack([rnd((1, hidden)) for _ in range(num_layers)])
    W2_all = jnp.stack([rnd((hidden, emb_dim)) for _ in range(num_layers)])
    b2_all = jnp.stack([rnd((1, emb_dim)) for _ in range(num_layers)])
    # BatchNorm1d defaults (eval mode)
    gamma_all = jnp.ones((num_layers, 1, emb_dim), jnp.float32)
    beta_all = jnp.zeros((num_layers, 1, emb_dim), jnp.float32)
    rmean_all = jnp.zeros((num_layers, 1, emb_dim), jnp.float32)
    rvar_all = jnp.ones((num_layers, 1, emb_dim), jnp.float32)

    # head: w = Linear(256, emb_dim), predict = Linear(emb_dim, n_tasks)
    Ww = rnd((s_emb_dim, emb_dim))
    bw = rnd((1, emb_dim))
    Wp = rnd((emb_dim, n_tasks))
    bp = rnd((1, n_tasks))

    # TODO(synk): synthetic stand-in for self.smodel.embed(g, g.ndata['attr'])
    s_embed = rnd((N, s_emb_dim), scale=1.0)

    # --- pre-processing for the kernel (hoist + pad + cast) ---------------------
    # Hoist the layer-independent edge aggregation B @ eemb_l out of the loop.
    Bemb_all = jnp.einsum('ne,led->lnd', B, eemb_all)                       # (L, N, D)

    A_k     = A.astype(jnp.bfloat16)                     # exact small integers
    h0_k    = pad_last(h0, (Dp,))
    Bemb_k  = pad_last(Bemb_all, (Dp,))
    W1_k    = pad_last(W1_all, (Dp, Hp)).astype(jnp.bfloat16)
    b1_k    = pad_last(b1_all, (1, Hp))
    W2_k    = pad_last(W2_all, (Hp, Dp)).astype(jnp.bfloat16)
    b2_k    = pad_last(b2_all, (1, Dp))
    gamma_k = pad_last(gamma_all, (1, Dp))
    beta_k  = pad_last(beta_all, (1, Dp))
    rmean_k = pad_last(rmean_all, (1, Dp))
    rvar_k  = pad_last(rvar_all, (1, Dp))
    semb_k  = s_embed.astype(jnp.bfloat16)
    Ww_k    = pad_last(Ww, (Dp,)).astype(jnp.bfloat16)
    bw_k    = pad_last(bw, (1, Dp))
    P_k     = pad_last(P, (Gp, N))
    Wp_k    = pad_last(Wp, (Dp, Tp))
    bp_k    = pad_last(bp, (1, Tp))

    # --- run --------------------------------------------------------------------
    node_feats_pad, head_pad = run_ginp(
        A_k, h0_k, Bemb_k, W1_k, b1_k, W2_k, b2_k,
        gamma_k, beta_k, rmean_k, rvar_k,
        semb_k, Ww_k, bw_k, P_k, Wp_k, bp_k)
    out = head_pad[:n_graphs, :n_tasks]
    out = jax.block_until_ready(out)

    ref = reference(A, B, h0, eemb_all, W1_all, b1_all, W2_all, b2_all,
                    gamma_all, beta_all, rmean_all, rvar_all,
                    s_embed, Ww, bw, P, Wp, bp)
    assert out.shape == (n_graphs, n_tasks)
    assert jnp.allclose(out, ref, atol=2e-2, rtol=2e-2), (out, ref)

    print("KERNEL_OK")
</pallas_src>

<mosaic_0001>
module attributes {stable_mosaic.version = 11 : i64} {
  func.func @ginp_fused_kernel(%arg0: i32, %arg1: memref<16x16xbf16, #tpu.memory_space<vmem>>, %arg2: memref<16x128xf32, #tpu.memory_space<vmem>>, %arg3: memref<1x16x128xf32, #tpu.memory_space<vmem>>, %arg4: memref<1x128x128xbf16, #tpu.memory_space<vmem>>, %arg5: memref<1x1x128xf32, #tpu.memory_space<vmem>>, %arg6: memref<1x128x128xbf16, #tpu.memory_space<vmem>>, %arg7: memref<1x1x128xf32, #tpu.memory_space<vmem>>, %arg8: memref<1x1x128xf32, #tpu.memory_space<vmem>>, %arg9: memref<1x1x128xf32, #tpu.memory_space<vmem>>, %arg10: memref<1x1x128xf32, #tpu.memory_space<vmem>>, %arg11: memref<1x1x128xf32, #tpu.memory_space<vmem>>, %arg12: memref<16x256xbf16, #tpu.memory_space<vmem>>, %arg13: memref<256x128xbf16, #tpu.memory_space<vmem>>, %arg14: memref<1x128xf32, #tpu.memory_space<vmem>>, %arg15: memref<8x16xf32, #tpu.memory_space<vmem>>, %arg16: memref<128x128xf32, #tpu.memory_space<vmem>>, %arg17: memref<1x128xf32, #tpu.memory_space<vmem>>, %arg18: memref<16x128xf32, #tpu.memory_space<vmem>>, %arg19: memref<8x128xf32, #tpu.memory_space<vmem>>, %arg20: memref<16x128xf32, #tpu.memory_space<vmem>>) attributes {dimension_semantics = [#tpu.dimension_semantics<arbitrary>], iteration_bounds = array<i64: 3>, scalar_prefetch = 0 : i64, scratch_operands = 1 : i64, tpu.core_type = #tpu.core_type<tc>, window_params = [{pipeline_mode = #tpu.pipeline_mode<synchronous>, transform_indices = @transform_0, window_bounds = array<i64: 16, 16>}, {pipeline_mode = #tpu.pipeline_mode<synchronous>, transform_indices = @transform_1, window_bounds = array<i64: 16, 128>}, {transform_indices = @transform_2, window_bounds = array<i64: 1, 16, 128>}, {transform_indices = @transform_3, window_bounds = array<i64: 1, 128, 128>}, {transform_indices = @transform_4, window_bounds = array<i64: 1, 1, 128>}, {transform_indices = @transform_5, window_bounds = array<i64: 1, 128, 128>}, {transform_indices = @transform_6, window_bounds = array<i64: 1, 1, 128>}, {transform_indices = @transform_7, window_bounds = array<i64: 1, 1, 128>}, {transform_indices = @transform_8, window_bounds = array<i64: 1, 1, 128>}, {transform_indices = @transform_9, window_bounds = array<i64: 1, 1, 128>}, {transform_indices = @transform_10, window_bounds = array<i64: 1, 1, 128>}, {pipeline_mode = #tpu.pipeline_mode<synchronous>, transform_indices = @transform_11, window_bounds = array<i64: 16, 256>}, {pipeline_mode = #tpu.pipeline_mode<synchronous>, transform_indices = @transform_12, window_bounds = array<i64: 256, 128>}, {pipeline_mode = #tpu.pipeline_mode<synchronous>, transform_indices = @transform_13, window_bounds = array<i64: 1, 128>}, {pipeline_mode = #tpu.pipeline_mode<synchronous>, transform_indices = @transform_14, window_bounds = array<i64: 8, 16>}, {pipeline_mode = #tpu.pipeline_mode<synchronous>, transform_indices = @transform_15, window_bounds = array<i64: 128, 128>}, {pipeline_mode = #tpu.pipeline_mode<synchronous>, transform_indices = @transform_16, window_bounds = array<i64: 1, 128>}, {pipeline_mode = #tpu.pipeline_mode<synchronous>, transform_indices = @transform_17, window_bounds = array<i64: 16, 128>}, {pipeline_mode = #tpu.pipeline_mode<synchronous>, transform_indices = @transform_18, window_bounds = array<i64: 8, 128>}]} {
    %c0_i32 = arith.constant 0 : i32
    %0 = arith.cmpi eq, %arg0, %c0_i32 : i32
    %1 = arith.extui %0 : i1 to i32
    %c0_i32_0 = arith.constant 0 : i32
    %2 = arith.cmpi ne, %1, %c0_i32_0 : i32
    scf.if %2 {
      %c0_38 = arith.constant 0 : index
      %c0_39 = arith.constant 0 : index
      %53 = vector.load %arg2[%c0_38, %c0_39] : memref<16x128xf32, #tpu.memory_space<vmem>>, vector<16x128xf32>
      %c0_40 = arith.constant 0 : index
      %c0_41 = arith.constant 0 : index
      %54 = vector.load %arg18[%c0_40, %c0_41] : memref<16x128xf32, #tpu.memory_space<vmem>>, vector<16x128xf32>
      tpu.vector_store %arg18[%c0_40, %c0_41], %53 {strides = array<i32>} : memref<16x128xf32, #tpu.memory_space<vmem>>, vector<16x128xf32>,
      %c0_42 = arith.constant 0 : index
      %c0_43 = arith.constant 0 : index
      %55 = vector.load %arg12[%c0_42, %c0_43] : memref<16x256xbf16, #tpu.memory_space<vmem>>, vector<16x256xbf16>
      %c0_44 = arith.constant 0 : index
      %c0_45 = arith.constant 0 : index
      %56 = vector.load %arg13[%c0_44, %c0_45] : memref<256x128xbf16, #tpu.memory_space<vmem>>, vector<256x128xbf16>
      %cst_46 = arith.constant dense<0.000000e+00> : vector<16x128xf32>
      %57 = tpu.matmul %55, %56, %cst_46 {dimension_numbers = #tpu.dot_dimension_numbers<[1], [0], [0], [1], [0, 0, 1, 1], [], []>} : vector<16x256xbf16>, vector<256x128xbf16>, vector<16x128xf32> -> vector<16x128xf32>
      %c0_47 = arith.constant 0 : index
      %c0_48 = arith.constant 0 : index
      %58 = vector.load %arg14[%c0_47, %c0_48] : memref<1x128xf32, #tpu.memory_space<vmem>>, vector<1x128xf32>
      %59 = vector.broadcast %58 : vector<1x128xf32> to vector<16x128xf32>
      %60 = arith.addf %57, %59 : vector<16x128xf32>
      %c0_49 = arith.constant 0 : index
      %c0_50 = arith.constant 0 : index
      %61 = vector.load %arg20[%c0_49, %c0_50] : memref<16x128xf32, #tpu.memory_space<vmem>>, vector<16x128xf32>
      tpu.vector_store %arg20[%c0_49, %c0_50], %60 {strides = array<i32>} : memref<16x128xf32, #tpu.memory_space<vmem>>, vector<16x128xf32>,
      %cst_51 = arith.constant 0.000000e+00 : f32
      %62 = vector.broadcast %cst_51 : f32 to vector<8x128xf32>
      %c0_52 = arith.constant 0 : index
      %c0_53 = arith.constant 0 : index
      %63 = vector.load %arg19[%c0_52, %c0_53] : memref<8x128xf32, #tpu.memory_space<vmem>>, vector<8x128xf32>
      tpu.vector_store %arg19[%c0_52, %c0_53], %62 {strides = array<i32>} : memref<8x128xf32, #tpu.memory_space<vmem>>, vector<8x128xf32>,
    } else {
    }
    %c0 = arith.constant 0 : index
    %c0_1 = arith.constant 0 : index
    %3 = vector.load %arg18[%c0, %c0_1] : memref<16x128xf32, #tpu.memory_space<vmem>>, vector<16x128xf32>
    %c0_2 = arith.constant 0 : index
    %c0_3 = arith.constant 0 : index
    %4 = vector.load %arg1[%c0_2, %c0_3] : memref<16x16xbf16, #tpu.memory_space<vmem>>, vector<16x16xbf16>
    %5 = arith.truncf %3 : vector<16x128xf32> to vector<16x128xbf16>
    %cst = arith.constant dense<0.000000e+00> : vector<16x128xf32>
    %6 = tpu.matmul %4, %5, %cst {dimension_numbers = #tpu.dot_dimension_numbers<[1], [0], [0], [1], [0, 0, 1, 1], [], []>} : vector<16x16xbf16>, vector<16x128xbf16>, vector<16x128xf32> -> vector<16x128xf32>
    %c0_4 = arith.constant 0 : index
    %c0_5 = arith.constant 0 : index
    %c0_6 = arith.constant 0 : index
    %7 = vector.load %arg3[%c0_4, %c0_5, %c0_6] : memref<1x16x128xf32, #tpu.memory_space<vmem>>, vector<1x16x128xf32>
    %8 = vector.shape_cast %7 : vector<1x16x128xf32> to vector<16x128xf32>
    %9 = arith.addf %6, %8 : vector<16x128xf32>
    %10 = arith.truncf %9 : vector<16x128xf32> to vector<16x128xbf16>
    %c0_7 = arith.constant 0 : index
    %c0_8 = arith.constant 0 : index
    %c0_9 = arith.constant 0 : index
    %11 = vector.load %arg4[%c0_7, %c0_8, %c0_9] : memref<1x128x128xbf16, #tpu.memory_space<vmem>>, vector<1x128x128xbf16>
    %12 = vector.shape_cast %11 : vector<1x128x128xbf16> to vector<128x128xbf16>
    %cst_10 = arith.constant dense<0.000000e+00> : vector<16x128xf32>
    %13 = tpu.matmul %10, %12, %cst_10 {dimension_numbers = #tpu.dot_dimension_numbers<[1], [0], [0], [1], [0, 0, 1, 1], [], []>} : vector<16x128xbf16>, vector<128x128xbf16>, vector<16x128xf32> -> vector<16x128xf32>
    %c0_11 = arith.constant 0 : index
    %c0_12 = arith.constant 0 : index
    %c0_13 = arith.constant 0 : index
    %14 = vector.load %arg5[%c0_11, %c0_12, %c0_13] : memref<1x1x128xf32, #tpu.memory_space<vmem>>, vector<1x1x128xf32>
    %15 = vector.shape_cast %14 : vector<1x1x128xf32> to vector<1x128xf32>
    %16 = vector.broadcast %15 : vector<1x128xf32> to vector<16x128xf32>
    %17 = arith.addf %13, %16 : vector<16x128xf32>
    %cst_14 = arith.constant 0.000000e+00 : f32
    %18 = vector.broadcast %cst_14 : f32 to vector<16x128xf32>
    %19 = arith.maximumf %17, %18 : vector<16x128xf32>
    %20 = arith.truncf %19 : vector<16x128xf32> to vector<16x128xbf16>
    %c0_15 = arith.constant 0 : index
    %c0_16 = arith.constant 0 : index
    %c0_17 = arith.constant 0 : index
    %21 = vector.load %arg6[%c0_15, %c0_16, %c0_17] : memref<1x128x128xbf16, #tpu.memory_space<vmem>>, vector<1x128x128xbf16>
    %22 = vector.shape_cast %21 : vector<1x128x128xbf16> to vector<128x128xbf16>
    %cst_18 = arith.constant dense<0.000000e+00> : vector<16x128xf32>
    %23 = tpu.matmul %20, %22, %cst_18 {dimension_numbers = #tpu.dot_dimension_numbers<[1], [0], [0], [1], [0, 0, 1, 1], [], []>} : vector<16x128xbf16>, vector<128x128xbf16>, vector<16x128xf32> -> vector<16x128xf32>
    %c0_19 = arith.constant 0 : index
    %c0_20 = arith.constant 0 : index
    %c0_21 = arith.constant 0 : index
    %24 = vector.load %arg7[%c0_19, %c0_20, %c0_21] : memref<1x1x128xf32, #tpu.memory_space<vmem>>, vector<1x1x128xf32>
    %25 = vector.shape_cast %24 : vector<1x1x128xf32> to vector<1x128xf32>
    %26 = vector.broadcast %25 : vector<1x128xf32> to vector<16x128xf32>
    %27 = arith.addf %23, %26 : vector<16x128xf32>
    %c0_22 = arith.constant 0 : index
    %c0_23 = arith.constant 0 : index
    %c0_24 = arith.constant 0 : index
    %28 = vector.load %arg10[%c0_22, %c0_23, %c0_24] : memref<1x1x128xf32, #tpu.memory_space<vmem>>, vector<1x1x128xf32>
    %29 = vector.shape_cast %28 : vector<1x1x128xf32> to vector<1x128xf32>
    %30 = vector.broadcast %29 : vector<1x128xf32> to vector<16x128xf32>
    %31 = arith.subf %27, %30 : vector<16x128xf32>
    %c0_25 = arith.constant 0 : index
    %c0_26 = arith.constant 0 : index
    %c0_27 = arith.constant 0 : index
    %32 = vector.load %arg11[%c0_25, %c0_26, %c0_27] : memref<1x1x128xf32, #tpu.memory_space<vmem>>, vector<1x1x128xf32>
    %33 = vector.shape_cast %32 : vector<1x1x128xf32> to vector<1x128xf32>
    %cst_28 = arith.constant 9.99999974E-6 : f32
    %34 = vector.broadcast %cst_28 : f32 to vector<1x128xf32>
    %35 = arith.addf %33, %34 : vector<1x128xf32>
    %36 = math.rsqrt %35 : vector<1x128xf32>
    %37 = vector.broadcast %36 : vector<1x128xf32> to vector<16x128xf32>
    %38 = arith.mulf %31, %37 : vector<16x128xf32>
    %c0_29 = arith.constant 0 : index
    %c0_30 = arith.constant 0 : index
    %c0_31 = arith.constant 0 : index
    %39 = vector.load %arg8[%c0_29, %c0_30, %c0_31] : memref<1x1x128xf32, #tpu.memory_space<vmem>>, vector<1x1x128xf32>
    %40 = vector.shape_cast %39 : vector<1x1x128xf32> to vector<1x128xf32>
    %41 = vector.broadcast %40 : vector<1x128xf32> to vector<16x128xf32>
    %42 = arith.mulf %38, %41 : vector<16x128xf32>
    %c0_32 = arith.constant 0 : index
    %c0_33 = arith.constant 0 : index
    %c0_34 = arith.constant 0 : index
    %43 = vector.load %arg9[%c0_32, %c0_33, %c0_34] : memref<1x1x128xf32, #tpu.memory_space<vmem>>, vector<1x1x128xf32>
    %44 = vector.shape_cast %43 : vector<1x1x128xf32> to vector<1x128xf32>
    %45 = vector.broadcast %44 : vector<1x128xf32> to vector<16x128xf32>
    %46 = arith.addf %42, %45 : vector<16x128xf32>
    %c2_i32 = arith.constant 2 : i32
    %47 = arith.cmpi slt, %arg0, %c2_i32 : i32
    %48 = arith.extui %47 : i1 to i32
    %c0_i32_35 = arith.constant 0 : i32
    %49 = arith.cmpi ne, %48, %c0_i32_35 : i32
    scf.if %49 {
      %cst_38 = arith.constant 0.000000e+00 : f32
      %53 = vector.broadcast %cst_38 : f32 to vector<16x128xf32>
      %54 = arith.maximumf %46, %53 : vector<16x128xf32>
      %c0_39 = arith.constant 0 : index
      %c0_40 = arith.constant 0 : index
      %55 = vector.load %arg18[%c0_39, %c0_40] : memref<16x128xf32, #tpu.memory_space<vmem>>, vector<16x128xf32>
      tpu.vector_store %arg18[%c0_39, %c0_40], %54 {strides = array<i32>} : memref<16x128xf32, #tpu.memory_space<vmem>>, vector<16x128xf32>,
    } else {
    }
    %c2_i32_36 = arith.constant 2 : i32
    %50 = arith.cmpi eq, %arg0, %c2_i32_36 : i32
    %51 = arith.extui %50 : i1 to i32
    %c0_i32_37 = arith.constant 0 : i32
    %52 = arith.cmpi ne, %51, %c0_i32_37 : i32
    scf.if %52 {
      %c0_38 = arith.constant 0 : index
      %c0_39 = arith.constant 0 : index
      %53 = vector.load %arg18[%c0_38, %c0_39] : memref<16x128xf32, #tpu.memory_space<vmem>>, vector<16x128xf32>
      tpu.vector_store %arg18[%c0_38, %c0_39], %46 {strides = array<i32>} : memref<16x128xf32, #tpu.memory_space<vmem>>, vector<16x128xf32>,
      %c0_40 = arith.constant 0 : index
      %c0_41 = arith.constant 0 : index
      %54 = vector.load %arg20[%c0_40, %c0_41] : memref<16x128xf32, #tpu.memory_space<vmem>>, vector<16x128xf32>
      %55 = arith.addf %46, %54 : vector<16x128xf32>
      %c0_42 = arith.constant 0 : index
      %c0_43 = arith.constant 0 : index
      %56 = vector.load %arg15[%c0_42, %c0_43] : memref<8x16xf32, #tpu.memory_space<vmem>>, vector<8x16xf32>
      %cst_44 = arith.constant dense<0.000000e+00> : vector<8x128xf32>
      %57 = tpu.matmul %56, %55, %cst_44 {dimension_numbers = #tpu.dot_dimension_numbers<[1], [0], [0], [1], [0, 0, 1, 1], [], []>} : vector<8x16xf32>, vector<16x128xf32>, vector<8x128xf32> -> vector<8x128xf32>
      %c0_45 = arith.constant 0 : index
      %c0_46 = arith.constant 0 : index
      %58 = vector.load %arg16[%c0_45, %c0_46] : memref<128x128xf32, #tpu.memory_space<vmem>>, vector<128x128xf32>
      %cst_47 = arith.constant dense<0.000000e+00> : vector<8x128xf32>
      %59 = tpu.matmul %57, %58, %cst_47 {dimension_numbers = #tpu.dot_dimension_numbers<[1], [0], [0], [1], [0, 0, 1, 1], [], []>} : vector<8x128xf32>, vector<128x128xf32>, vector<8x128xf32> -> vector<8x128xf32>
      %c0_48 = arith.constant 0 : index
      %c0_49 = arith.constant 0 : index
      %60 = vector.load %arg17[%c0_48, %c0_49] : memref<1x128xf32, #tpu.memory_space<vmem>>, vector<1x128xf32>
      %61 = vector.broadcast %60 : vector<1x128xf32> to vector<8x128xf32>
      %62 = arith.addf %59, %61 : vector<8x128xf32>
      %c0_50 = arith.constant 0 : index
      %c0_51 = arith.constant 0 : index
      %63 = vector.load %arg19[%c0_50, %c0_51] : memref<8x128xf32, #tpu.memory_space<vmem>>, vector<8x128xf32>
      tpu.vector_store %arg19[%c0_50, %c0_51], %62 {strides = array<i32>} : memref<8x128xf32, #tpu.memory_space<vmem>>, vector<8x128xf32>,
    } else {
    }
    return
  }
  func.func @transform_0(%arg0: i32) -> (i32, i32) {
    %c0_i32 = arith.constant 0 : i32
    %c0_i32_0 = arith.constant 0 : i32
    %c0_i32_1 = arith.constant 0 : i32
    return %c0_i32, %c0_i32_0 : i32, i32
  }
  func.func @transform_1(%arg0: i32) -> (i32, i32) {
    %c0_i32 = arith.constant 0 : i32
    %c0_i32_0 = arith.constant 0 : i32
    %c0_i32_1 = arith.constant 0 : i32
    return %c0_i32, %c0_i32_0 : i32, i32
  }
  func.func @transform_2(%arg0: i32) -> (i32, i32, i32) {
    %c0_i32 = arith.constant 0 : i32
    %c0_i32_0 = arith.constant 0 : i32
    %c0_i32_1 = arith.constant 0 : i32
    return %arg0, %c0_i32, %c0_i32_0 : i32, i32, i32
  }
  func.func @transform_3(%arg0: i32) -> (i32, i32, i32) {
    %c0_i32 = arith.constant 0 : i32
    %c0_i32_0 = arith.constant 0 : i32
    %c0_i32_1 = arith.constant 0 : i32
    return %arg0, %c0_i32, %c0_i32_0 : i32, i32, i32
  }
  func.func @transform_4(%arg0: i32) -> (i32, i32, i32) {
    %c0_i32 = arith.constant 0 : i32
    %c0_i32_0 = arith.constant 0 : i32
    %c0_i32_1 = arith.constant 0 : i32
    return %arg0, %c0_i32, %c0_i32_0 : i32, i32, i32
  }
  func.func @transform_5(%arg0: i32) -> (i32, i32, i32) {
    %c0_i32 = arith.constant 0 : i32
    %c0_i32_0 = arith.constant 0 : i32
    %c0_i32_1 = arith.constant 0 : i32
    return %arg0, %c0_i32, %c0_i32_0 : i32, i32, i32
  }
  func.func @transform_6(%arg0: i32) -> (i32, i32, i32) {
    %c0_i32 = arith.constant 0 : i32
    %c0_i32_0 = arith.constant 0 : i32
    %c0_i32_1 = arith.constant 0 : i32
    return %arg0, %c0_i32, %c0_i32_0 : i32, i32, i32
  }
  func.func @transform_7(%arg0: i32) -> (i32, i32, i32) {
    %c0_i32 = arith.constant 0 : i32
    %c0_i32_0 = arith.constant 0 : i32
    %c0_i32_1 = arith.constant 0 : i32
    return %arg0, %c0_i32, %c0_i32_0 : i32, i32, i32
  }
  func.func @transform_8(%arg0: i32) -> (i32, i32, i32) {
    %c0_i32 = arith.constant 0 : i32
    %c0_i32_0 = arith.constant 0 : i32
    %c0_i32_1 = arith.constant 0 : i32
    return %arg0, %c0_i32, %c0_i32_0 : i32, i32, i32
  }
  func.func @transform_9(%arg0: i32) -> (i32, i32, i32) {
    %c0_i32 = arith.constant 0 : i32
    %c0_i32_0 = arith.constant 0 : i32
    %c0_i32_1 = arith.constant 0 : i32
    return %arg0, %c0_i32, %c0_i32_0 : i32, i32, i32
  }
  func.func @transform_10(%arg0: i32) -> (i32, i32, i32) {
    %c0_i32 = arith.constant 0 : i32
    %c0_i32_0 = arith.constant 0 : i32
    %c0_i32_1 = arith.constant 0 : i32
    return %arg0, %c0_i32, %c0_i32_0 : i32, i32, i32
  }
  func.func @transform_11(%arg0: i32) -> (i32, i32) {
    %c0_i32 = arith.constant 0 : i32
    %c0_i32_0 = arith.constant 0 : i32
    %c0_i32_1 = arith.constant 0 : i32
    return %c0_i32, %c0_i32_0 : i32, i32
  }
  func.func @transform_12(%arg0: i32) -> (i32, i32) {
    %c0_i32 = arith.constant 0 : i32
    %c0_i32_0 = arith.constant 0 : i32
    %c0_i32_1 = arith.constant 0 : i32
    return %c0_i32, %c0_i32_0 : i32, i32
  }
  func.func @transform_13(%arg0: i32) -> (i32, i32) {
    %c0_i32 = arith.constant 0 : i32
    %c0_i32_0 = arith.constant 0 : i32
    %c0_i32_1 = arith.constant 0 : i32
    return %c0_i32, %c0_i32_0 : i32, i32
  }
  func.func @transform_14(%arg0: i32) -> (i32, i32) {
    %c0_i32 = arith.constant 0 : i32
    %c0_i32_0 = arith.constant 0 : i32
    %c0_i32_1 = arith.constant 0 : i32
    return %c0_i32, %c0_i32_0 : i32, i32
  }
  func.func @transform_15(%arg0: i32) -> (i32, i32) {
    %c0_i32 = arith.constant 0 : i32
    %c0_i32_0 = arith.constant 0 : i32
    %c0_i32_1 = arith.constant 0 : i32
    return %c0_i32, %c0_i32_0 : i32, i32
  }
  func.func @transform_16(%arg0: i32) -> (i32, i32) {
    %c0_i32 = arith.constant 0 : i32
    %c0_i32_0 = arith.constant 0 : i32
    %c0_i32_1 = arith.constant 0 : i32
    return %c0_i32, %c0_i32_0 : i32, i32
  }
  func.func @transform_17(%arg0: i32) -> (i32, i32) {
    %c0_i32 = arith.constant 0 : i32
    %c0_i32_0 = arith.constant 0 : i32
    %c0_i32_1 = arith.constant 0 : i32
    return %c0_i32, %c0_i32_0 : i32, i32
  }
  func.func @transform_18(%arg0: i32) -> (i32, i32) {
    %c0_i32 = arith.constant 0 : i32
    %c0_i32_0 = arith.constant 0 : i32
    %c0_i32_1 = arith.constant 0 : i32
    return %c0_i32, %c0_i32_0 : i32, i32
  }
}

</mosaic_0001>

<llo_original>
// kernel: tpu_custom_call.1
$region0: #{tpu_custom_call.1}
  #allocation0 [shape = 'u32[]', space=smem, size = 0x4, offset = 0x4, fixed_abs, tag = 'smem constant byte address 0x4 - core index']
  #allocation1 [shape = 'u32[144,128]{1,0:T(1,128)}', space=vmem, size = 0x12000, scoped, tag = 'internal scratch']
  #allocation2 [shape = 'f32[16,128]{1,0:T(8,128)}', space=vmem, size = 0x2000, scoped, tag = 'scratch operand']
  %s0 = inlined_call_operand.hbm [shape: bf16[16,16], index: 0, kind: input, shape index: {}]
  %s1 = inlined_call_operand.hbm [shape: f32[16,128], index: 1, kind: input, shape index: {}]
  %s2 = inlined_call_operand.hbm [shape: f32[3,16,128], index: 2, kind: input, shape index: {}]
  %s3 = inlined_call_operand.hbm [shape: bf16[3,128,128], index: 3, kind: input, shape index: {}]
  %s4 = inlined_call_operand.hbm [shape: f32[3,1,128], index: 4, kind: input, shape index: {}]
  %s5 = inlined_call_operand.hbm [shape: bf16[3,128,128], index: 5, kind: input, shape index: {}]
  %s6 = inlined_call_operand.hbm [shape: f32[3,1,128], index: 6, kind: input, shape index: {}]
  %s7 = inlined_call_operand.hbm [shape: f32[3,1,128], index: 7, kind: input, shape index: {}]
  %s8 = inlined_call_operand.hbm [shape: f32[3,1,128], index: 8, kind: input, shape index: {}]
  %s9 = inlined_call_operand.hbm [shape: f32[3,1,128], index: 9, kind: input, shape index: {}]
  %s10 = inlined_call_operand.hbm [shape: f32[3,1,128], index: 10, kind: input, shape index: {}]
  %s11 = inlined_call_operand.hbm [shape: bf16[16,256], index: 11, kind: input, shape index: {}]
  %s12 = inlined_call_operand.hbm [shape: bf16[256,128], index: 12, kind: input, shape index: {}]
  %s13 = inlined_call_operand.hbm [shape: f32[1,128], index: 13, kind: input, shape index: {}]
  %s14 = inlined_call_operand.hbm [shape: f32[8,16], index: 14, kind: input, shape index: {}]
  %s15 = inlined_call_operand.hbm [shape: f32[128,128], index: 15, kind: input, shape index: {}]
  %s16 = inlined_call_operand.hbm [shape: f32[1,128], index: 16, kind: input, shape index: {}]
  %s17 = inlined_call_operand.hbm [shape: f32[16,128], index: 17, kind: output, shape index: {0}]
  %s18 = inlined_call_operand.hbm [shape: f32[8,128], index: 18, kind: output, shape index: {1}]
  %19 = xla_tuple %s17, %s18
  %s20 = sld [smem:[#allocation0]]
  $region189: #{tpu_custom_call.1} parent=0
    _
  %s22 = ssub.s32 1, %s20
  %s23 = scalar_select 0, %s22, %s20
  $region1: #{tpu_custom_call.1} parent=0
    #allocation3 [shape = 'u8[4096]{0}', space=vmem, size = 0x1000, scoped, tag = 'input window, operand 0, single buffered']
    #allocation4 [shape = 's32[2]{0}', space=sflag, size = 0x8, scoped, tag = 'scoped memory for tpu_custom_call.1']
    #allocation5 [shape = 's32[2]{0}', space=sflag, size = 0x8, scoped, tag = 'scoped memory for tpu_custom_call.1']
    #allocation6 [shape = 'u8[8192]{0}', space=vmem, size = 0x2000, scoped, tag = 'input window, operand 1, single buffered']
    #allocation7 [shape = 's32[1]{0}', space=sflag, size = 0x4, scoped, tag = 'scoped memory for tpu_custom_call.1']
    #allocation8 [shape = 'u8[16384]{0}', space=vmem, size = 0x4000, scoped, tag = 'input window, operand 2']
    #allocation9 [shape = 'u8[65536]{0}', space=vmem, size = 0x10000, scoped, tag = 'input window, operand 3']
    #allocation10 [shape = 'u8[1024]{0}', space=vmem, size = 0x400, scoped, tag = 'input window, operand 4']
    #allocation11 [shape = 'u8[65536]{0}', space=vmem, size = 0x10000, scoped, tag = 'input window, operand 5']
    #allocation12 [shape = 'u8[1024]{0}', space=vmem, size = 0x400, scoped, tag = 'input window, operand 6']
    #allocation13 [shape = 'u8[1024]{0}', space=vmem, size = 0x400, scoped, tag = 'input window, operand 7']
    #allocation14 [shape = 'u8[1024]{0}', space=vmem, size = 0x400, scoped, tag = 'input window, operand 8']
    #allocation15 [shape = 'u8[1024]{0}', space=vmem, size = 0x400, scoped, tag = 'input window, operand 9']
    #allocation16 [shape = 'u8[1024]{0}', space=vmem, size = 0x400, scoped, tag = 'input window, operand 10']
    #allocation17 [shape = 'u8[8192]{0}', space=vmem, size = 0x2000, scoped, tag = 'input window, operand 11, single buffered']
    #allocation18 [shape = 'u8[65536]{0}', space=vmem, size = 0x10000, scoped, tag = 'input window, operand 12, single buffered']
    #allocation19 [shape = 's32[1]{0}', space=sflag, size = 0x4, scoped, tag = 'scoped memory for tpu_custom_call.1']
    #allocation20 [shape = 'u8[512]{0}', space=vmem, size = 0x400, scoped, tag = 'input window, operand 13, single buffered']
    #allocation21 [shape = 'u8[4096]{0}', space=vmem, size = 0x1000, scoped, tag = 'input window, operand 14, single buffered']
    #allocation22 [shape = 's32[1]{0}', space=sflag, size = 0x4, scoped, tag = 'scoped memory for tpu_custom_call.1']
    #allocation23 [shape = 'u8[65536]{0}', space=vmem, size = 0x10000, scoped, tag = 'input window, operand 15, single buffered']
    #allocation24 [shape = 'u8[512]{0}', space=vmem, size = 0x400, scoped, tag = 'input window, operand 16, single buffered']
    #allocation25 [shape = 's32[1]{0}', space=sflag, size = 0x4, scoped, tag = 'scoped memory for tpu_custom_call.1']
    #allocation26 [shape = 'u8[8192]{0}', space=vmem, size = 0x2000, scoped, tag = 'output window, operand 0, single buffered']
    #allocation27 [shape = 'u8[4096]{0}', space=vmem, size = 0x1000, scoped, tag = 'output window, operand 1, single buffered']
    #allocation28 [shape = 's32[1]{0}', space=sflag, size = 0x4, scoped, tag = 'scoped memory for tpu_custom_call.1']
    %24 = vsyncpa [#allocation4], 0
    %25 = vsyncpa [#allocation7], 0
    %26 = vsyncpa [#allocation19], 0
    %27 = vsyncpa [#allocation22], 0
    %28 = vsyncpa [#allocation25], 0
    %29 = vsyncpa [#allocation5], 0
    %30 = vsyncpa [#allocation28], 0
    loop: start=0, step=1, limit=5
    $region2: #{tpu_custom_call.1} parent=1 // loop_pre_header
      _
    $region3: #{tpu_custom_call.1} parent=1 // loop_header
      %s32 = sphi 0, %s36
      %p33 = scmp.ge.s32.totalorder %s32, 5
      %s40 = sphi 0, %s40
      %s42 = sphi 0, %s40
      %s43 = sphi 0, %s42
      %s57 = sphi 0, %s43
      %s61 = sphi 0, %s61
      %s63 = sphi 0, %s61
      %s64 = sphi 0, %s63
      %s78 = sphi 0, %s64
      %s84 = sphi 0, %s86
      %s87 = sphi 0, %s84
      %s88 = sphi 0, %s87
      %s104 = sphi 0, %s88
      %s110 = sphi 0, %s112
      %s113 = sphi 0, %s110
      %s114 = sphi 0, %s113
      %s130 = sphi 0, %s114
      %s136 = sphi 0, %s138
      %s139 = sphi 0, %s136
      %s140 = sphi 0, %s139
      %s156 = sphi 0, %s140
      %s162 = sphi 0, %s164
      %s165 = sphi 0, %s162
      %s166 = sphi 0, %s165
      %s182 = sphi 0, %s166
      %s188 = sphi 0, %s190
      %s191 = sphi 0, %s188
      %s192 = sphi 0, %s191
      %s208 = sphi 0, %s192
      %s214 = sphi 0, %s216
      %s217 = sphi 0, %s214
      %s218 = sphi 0, %s217
      %s234 = sphi 0, %s218
      %s240 = sphi 0, %s242
      %s243 = sphi 0, %s240
      %s244 = sphi 0, %s243
      %s260 = sphi 0, %s244
      %s266 = sphi 0, %s268
      %s269 = sphi 0, %s266
      %s270 = sphi 0, %s269
      %s286 = sphi 0, %s270
      %s292 = sphi 0, %s294
      %s295 = sphi 0, %s292
      %s296 = sphi 0, %s295
      %s312 = sphi 0, %s296
      %s316 = sphi 0, %s316
      %s318 = sphi 0, %s316
      %s319 = sphi 0, %s318
      %s333 = sphi 0, %s319
      %s337 = sphi 0, %s337
      %s339 = sphi 0, %s337
      %s340 = sphi 0, %s339
      %s354 = sphi 0, %s340
      %s358 = sphi 0, %s358
      %s360 = sphi 0, %s358
      %s361 = sphi 0, %s360
      %s375 = sphi 0, %s361
      %s379 = sphi 0, %s379
      %s381 = sphi 0, %s379
      %s382 = sphi 0, %s381
      %s396 = sphi 0, %s382
      %s400 = sphi 0, %s400
      %s402 = sphi 0, %s400
      %s403 = sphi 0, %s402
      %s417 = sphi 0, %s403
      %s421 = sphi 0, %s421
      %s423 = sphi 0, %s421
      %s424 = sphi 0, %s423
      %s438 = sphi 0, %s424
      %s442 = sphi 0, %s442
      %s444 = sphi 0, %s442
      %s445 = sphi 0, %s444
      %s459 = sphi 0, %s445
      %s463 = sphi 0, %s463
      %s465 = sphi 0, %s463
      %s466 = sphi 0, %s465
      %s480 = sphi 0, %s466
    $region4: #{tpu_custom_call.1} parent=1 // loop_header_branch
      %35 = sbr.rel (%p33) target = $region8
    $region5: #{tpu_custom_call.1} parent=1 // loop_body
      %s37 = ssub.s32 %s32, 1
      %s38 = ssub.s32 %s32, 2
      %s39 = sadd.s32 %s32, 1
      %s41 = sadd.s32 %s40, 1
      %p44 = scmp.eq.s32.totalorder %s32, 2
      %p45 = scmp.ne.s32.totalorder %s40, %s42
      %p46 = scmp.eq.s32.totalorder %s32, 0
      %p47 = por %p45, %p46
      %p48 = scmp.ne.s32.totalorder %s40, %s42
      %p49 = scmp.eq.s32.totalorder %s37, 2
      %p50 = por %p48, %p49
      %p51 = scmp.ne.s32.totalorder %s42, %s43
      %p52 = scmp.eq.s32.totalorder %s37, 0
      %p53 = por %p51, %p52
      %p54 = scmp.ne.s32.totalorder %s42, %s43
      %p55 = scmp.eq.s32.totalorder %s38, 2
      %p56 = por %p54, %p55
      %p58 = scmp.ne.s32.totalorder %s43, %s57
      %p59 = scmp.eq.s32.totalorder %s38, 0
      %p60 = por %p58, %p59
      %s62 = sadd.s32 %s61, 1
      %p65 = scmp.eq.s32.totalorder %s32, 2
      %p66 = scmp.ne.s32.totalorder %s61, %s63
      %p67 = scmp.eq.s32.totalorder %s32, 0
      %p68 = por %p66, %p67
      %p69 = scmp.ne.s32.totalorder %s61, %s63
      %p70 = scmp.eq.s32.totalorder %s37, 2
      %p71 = por %p69, %p70
      %p72 = scmp.ne.s32.totalorder %s63, %s64
      %p73 = scmp.eq.s32.totalorder %s37, 0
      %p74 = por %p72, %p73
      %p75 = scmp.ne.s32.totalorder %s63, %s64
      %p76 = scmp.eq.s32.totalorder %s38, 2
      %p77 = por %p75, %p76
      %p79 = scmp.ne.s32.totalorder %s64, %s78
      %p80 = scmp.eq.s32.totalorder %s38, 0
      %p81 = por %p79, %p80
      %s82 = ssub.s32 %s32, %s39
      %p83 = scmp.eq.s32.totalorder %s82, 0
      %s85 = sadd.s32 %s84, 1
      %s86 = scalar_select %p83, %s84, %s85
      %p89 = pneg %p83
      %p90 = scmp.eq.s32.totalorder %s32, 2
      %p91 = por %p89, %p90
      %p92 = scmp.ne.s32.totalorder %s84, %s87
      %p93 = scmp.eq.s32.totalorder %s32, 0
      %p94 = por %p92, %p93
      %p95 = scmp.ne.s32.totalorder %s84, %s87
      %p96 = scmp.eq.s32.totalorder %s37, 2
      %p97 = por %p95, %p96
      %p98 = scmp.ne.s32.totalorder %s87, %s88
      %p99 = scmp.eq.s32.totalorder %s37, 0
      %p100 = por %p98, %p99
      %p101 = scmp.ne.s32.totalorder %s87, %s88
      %p102 = scmp.eq.s32.totalorder %s38, 2
      %p103 = por %p101, %p102
      %p105 = scmp.ne.s32.totalorder %s88, %s104
      %p106 = scmp.eq.s32.totalorder %s38, 0
      %p107 = por %p105, %p106
      %s108 = ssub.s32 %s32, %s39
      %p109 = scmp.eq.s32.totalorder %s108, 0
      %s111 = sadd.s32 %s110, 1
      %s112 = scalar_select %p109, %s110, %s111
      %p115 = pneg %p109
      %p116 = scmp.eq.s32.totalorder %s32, 2
      %p117 = por %p115, %p116
      %p118 = scmp.ne.s32.totalorder %s110, %s113
      %p119 = scmp.eq.s32.totalorder %s32, 0
      %p120 = por %p118, %p119
      %p121 = scmp.ne.s32.totalorder %s110, %s113
      %p122 = scmp.eq.s32.totalorder %s37, 2
      %p123 = por %p121, %p122
      %p124 = scmp.ne.s32.totalorder %s113, %s114
      %p125 = scmp.eq.s32.totalorder %s37, 0
      %p126 = por %p124, %p125
      %p127 = scmp.ne.s32.totalorder %s113, %s114
      %p128 = scmp.eq.s32.totalorder %s38, 2
      %p129 = por %p127, %p128
      %p131 = scmp.ne.s32.totalorder %s114, %s130
      %p132 = scmp.eq.s32.totalorder %s38, 0
      %p133 = por %p131, %p132
      %s134 = ssub.s32 %s32, %s39
      %p135 = scmp.eq.s32.totalorder %s134, 0
      %s137 = sadd.s32 %s136, 1
      %s138 = scalar_select %p135, %s136, %s137
      %p141 = pneg %p135
      %p142 = scmp.eq.s32.totalorder %s32, 2
      %p143 = por %p141, %p142
      %p144 = scmp.ne.s32.totalorder %s136, %s139
      %p145 = scmp.eq.s32.totalorder %s32, 0
      %p146 = por %p144, %p145
      %p147 = scmp.ne.s32.totalorder %s136, %s139
      %p148 = scmp.eq.s32.totalorder %s37, 2
      %p149 = por %p147, %p148
      %p150 = scmp.ne.s32.totalorder %s139, %s140
      %p151 = scmp.eq.s32.totalorder %s37, 0
      %p152 = por %p150, %p151
      %p153 = scmp.ne.s32.totalorder %s139, %s140
      %p154 = scmp.eq.s32.totalorder %s38, 2
      %p155 = por %p153, %p154
      %p157 = scmp.ne.s32.totalorder %s140, %s156
      %p158 = scmp.eq.s32.totalorder %s38, 0
      %p159 = por %p157, %p158
      %s160 = ssub.s32 %s32, %s39
      %p161 = scmp.eq.s32.totalorder %s160, 0
      %s163 = sadd.s32 %s162, 1
      %s164 = scalar_select %p161, %s162, %s163
      %p167 = pneg %p161
      %p168 = scmp.eq.s32.totalorder %s32, 2
      %p169 = por %p167, %p168
      %p170 = scmp.ne.s32.totalorder %s162, %s165
      %p171 = scmp.eq.s32.totalorder %s32, 0
      %p172 = por %p170, %p171
      %p173 = scmp.ne.s32.totalorder %s162, %s165
      %p174 = scmp.eq.s32.totalorder %s37, 2
      %p175 = por %p173, %p174
      %p176 = scmp.ne.s32.totalorder %s165, %s166
      %p177 = scmp.eq.s32.totalorder %s37, 0
      %p178 = por %p176, %p177
      %p179 = scmp.ne.s32.totalorder %s165, %s166
      %p180 = scmp.eq.s32.totalorder %s38, 2
      %p181 = por %p179, %p180
      %p183 = scmp.ne.s32.totalorder %s166, %s182
      %p184 = scmp.eq.s32.totalorder %s38, 0
      %p185 = por %p183, %p184
      %s186 = ssub.s32 %s32, %s39
      %p187 = scmp.eq.s32.totalorder %s186, 0
      %s189 = sadd.s32 %s188, 1
      %s190 = scalar_select %p187, %s188, %s189
      %p193 = pneg %p187
      %p194 = scmp.eq.s32.totalorder %s32, 2
      %p195 = por %p193, %p194
      %p196 = scmp.ne.s32.totalorder %s188, %s191
      %p197 = scmp.eq.s32.totalorder %s32, 0
      %p198 = por %p196, %p197
      %p199 = scmp.ne.s32.totalorder %s188, %s191
      %p200 = scmp.eq.s32.totalorder %s37, 2
      %p201 = por %p199, %p200
      %p202 = scmp.ne.s32.totalorder %s191, %s192
      %p203 = scmp.eq.s32.totalorder %s37, 0
      %p204 = por %p202, %p203
      %p205 = scmp.ne.s32.totalorder %s191, %s192
      %p206 = scmp.eq.s32.totalorder %s38, 2
      %p207 = por %p205, %p206
      %p209 = scmp.ne.s32.totalorder %s192, %s208
      %p210 = scmp.eq.s32.totalorder %s38, 0
      %p211 = por %p209, %p210
      %s212 = ssub.s32 %s32, %s39
      %p213 = scmp.eq.s32.totalorder %s212, 0
      %s215 = sadd.s32 %s214, 1
      %s216 = scalar_select %p213, %s214, %s215
      %p219 = pneg %p213
      %p220 = scmp.eq.s32.totalorder %s32, 2
      %p221 = por %p219, %p220
      %p222 = scmp.ne.s32.totalorder %s214, %s217
      %p223 = scmp.eq.s32.totalorder %s32, 0
      %p224 = por %p222, %p223
      %p225 = scmp.ne.s32.totalorder %s214, %s217
      %p226 = scmp.eq.s32.totalorder %s37, 2
      %p227 = por %p225, %p226
      %p228 = scmp.ne.s32.totalorder %s217, %s218
      %p229 = scmp.eq.s32.totalorder %s37, 0
      %p230 = por %p228, %p229
      %p231 = scmp.ne.s32.totalorder %s217, %s218
      %p232 = scmp.eq.s32.totalorder %s38, 2
      %p233 = por %p231, %p232
      %p235 = scmp.ne.s32.totalorder %s218, %s234
      %p236 = scmp.eq.s32.totalorder %s38, 0
      %p237 = por %p235, %p236
      %s238 = ssub.s32 %s32, %s39
      %p239 = scmp.eq.s32.totalorder %s238, 0
      %s241 = sadd.s32 %s240, 1
      %s242 = scalar_select %p239, %s240, %s241
      %p245 = pneg %p239
      %p246 = scmp.eq.s32.totalorder %s32, 2
      %p247 = por %p245, %p246
      %p248 = scmp.ne.s32.totalorder %s240, %s243
      %p249 = scmp.eq.s32.totalorder %s32, 0
      %p250 = por %p248, %p249
      %p251 = scmp.ne.s32.totalorder %s240, %s243
      %p252 = scmp.eq.s32.totalorder %s37, 2
      %p253 = por %p251, %p252
      %p254 = scmp.ne.s32.totalorder %s243, %s244
      %p255 = scmp.eq.s32.totalorder %s37, 0
      %p256 = por %p254, %p255
      %p257 = scmp.ne.s32.totalorder %s243, %s244
      %p258 = scmp.eq.s32.totalorder %s38, 2
      %p259 = por %p257, %p258
      %p261 = scmp.ne.s32.totalorder %s244, %s260
      %p262 = scmp.eq.s32.totalorder %s38, 0
      %p263 = por %p261, %p262
      %s264 = ssub.s32 %s32, %s39
      %p265 = scmp.eq.s32.totalorder %s264, 0
      %s267 = sadd.s32 %s266, 1
      %s268 = scalar_select %p265, %s266, %s267
      %p271 = pneg %p265
      %p272 = scmp.eq.s32.totalorder %s32, 2
      %p273 = por %p271, %p272
      %p274 = scmp.ne.s32.totalorder %s266, %s269
      %p275 = scmp.eq.s32.totalorder %s32, 0
      %p276 = por %p274, %p275
      %p277 = scmp.ne.s32.totalorder %s266, %s269
      %p278 = scmp.eq.s32.totalorder %s37, 2
      %p279 = por %p277, %p278
      %p280 = scmp.ne.s32.totalorder %s269, %s270
      %p281 = scmp.eq.s32.totalorder %s37, 0
      %p282 = por %p280, %p281
      %p283 = scmp.ne.s32.totalorder %s269, %s270
      %p284 = scmp.eq.s32.totalorder %s38, 2
      %p285 = por %p283, %p284
      %p287 = scmp.ne.s32.totalorder %s270, %s286
      %p288 = scmp.eq.s32.totalorder %s38, 0
      %p289 = por %p287, %p288
      %s290 = ssub.s32 %s32, %s39
      %p291 = scmp.eq.s32.totalorder %s290, 0
      %s293 = sadd.s32 %s292, 1
      %s294 = scalar_select %p291, %s292, %s293
      %p297 = pneg %p291
      %p298 = scmp.eq.s32.totalorder %s32, 2
      %p299 = por %p297, %p298
      %p300 = scmp.ne.s32.totalorder %s292, %s295
      %p301 = scmp.eq.s32.totalorder %s32, 0
      %p302 = por %p300, %p301
      %p303 = scmp.ne.s32.totalorder %s292, %s295
      %p304 = scmp.eq.s32.totalorder %s37, 2
      %p305 = por %p303, %p304
      %p306 = scmp.ne.s32.totalorder %s295, %s296
      %p307 = scmp.eq.s32.totalorder %s37, 0
      %p308 = por %p306, %p307
      %p309 = scmp.ne.s32.totalorder %s295, %s296
      %p310 = scmp.eq.s32.totalorder %s38, 2
      %p311 = por %p309, %p310
      %p313 = scmp.ne.s32.totalorder %s296, %s312
      %p314 = scmp.eq.s32.totalorder %s38, 0
      %p315 = por %p313, %p314
      %s317 = sadd.s32 %s316, 1
      %p320 = scmp.eq.s32.totalorder %s32, 2
      %p321 = scmp.ne.s32.totalorder %s316, %s318
      %p322 = scmp.eq.s32.totalorder %s32, 0
      %p323 = por %p321, %p322
      %p324 = scmp.ne.s32.totalorder %s316, %s318
      %p325 = scmp.eq.s32.totalorder %s37, 2
      %p326 = por %p324, %p325
      %p327 = scmp.ne.s32.totalorder %s318, %s319
      %p328 = scmp.eq.s32.totalorder %s37, 0
      %p329 = por %p327, %p328
      %p330 = scmp.ne.s32.totalorder %s318, %s319
      %p331 = scmp.eq.s32.totalorder %s38, 2
      %p332 = por %p330, %p331
      %p334 = scmp.ne.s32.totalorder %s319, %s333
      %p335 = scmp.eq.s32.totalorder %s38, 0
      %p336 = por %p334, %p335
      %s338 = sadd.s32 %s337, 1
      %p341 = scmp.eq.s32.totalorder %s32, 2
      %p342 = scmp.ne.s32.totalorder %s337, %s339
      %p343 = scmp.eq.s32.totalorder %s32, 0
      %p344 = por %p342, %p343
      %p345 = scmp.ne.s32.totalorder %s337, %s339
      %p346 = scmp.eq.s32.totalorder %s37, 2
      %p347 = por %p345, %p346
      %p348 = scmp.ne.s32.totalorder %s339, %s340
      %p349 = scmp.eq.s32.totalorder %s37, 0
      %p350 = por %p348, %p349
      %p351 = scmp.ne.s32.totalorder %s339, %s340
      %p352 = scmp.eq.s32.totalorder %s38, 2
      %p353 = por %p351, %p352
      %p355 = scmp.ne.s32.totalorder %s340, %s354
      %p356 = scmp.eq.s32.totalorder %s38, 0
      %p357 = por %p355, %p356
      %s359 = sadd.s32 %s358, 1
      %p362 = scmp.eq.s32.totalorder %s32, 2
      %p363 = scmp.ne.s32.totalorder %s358, %s360
      %p364 = scmp.eq.s32.totalorder %s32, 0
      %p365 = por %p363, %p364
      %p366 = scmp.ne.s32.totalorder %s358, %s360
      %p367 = scmp.eq.s32.totalorder %s37, 2
      %p368 = por %p366, %p367
      %p369 = scmp.ne.s32.totalorder %s360, %s361
      %p370 = scmp.eq.s32.totalorder %s37, 0
      %p371 = por %p369, %p370
      %p372 = scmp.ne.s32.totalorder %s360, %s361
      %p373 = scmp.eq.s32.totalorder %s38, 2
      %p374 = por %p372, %p373
      %p376 = scmp.ne.s32.totalorder %s361, %s375
      %p377 = scmp.eq.s32.totalorder %s38, 0
      %p378 = por %p376, %p377
      %s380 = sadd.s32 %s379, 1
      %p383 = scmp.eq.s32.totalorder %s32, 2
      %p384 = scmp.ne.s32.totalorder %s379, %s381
      %p385 = scmp.eq.s32.totalorder %s32, 0
      %p386 = por %p384, %p385
      %p387 = scmp.ne.s32.totalorder %s379, %s381
      %p388 = scmp.eq.s32.totalorder %s37, 2
      %p389 = por %p387, %p388
      %p390 = scmp.ne.s32.totalorder %s381, %s382
      %p391 = scmp.eq.s32.totalorder %s37, 0
      %p392 = por %p390, %p391
      %p393 = scmp.ne.s32.totalorder %s381, %s382
      %p394 = scmp.eq.s32.totalorder %s38, 2
      %p395 = por %p393, %p394
      %p397 = scmp.ne.s32.totalorder %s382, %s396
      %p398 = scmp.eq.s32.totalorder %s38, 0
      %p399 = por %p397, %p398
      %s401 = sadd.s32 %s400, 1
      %p404 = scmp.eq.s32.totalorder %s32, 2
      %p405 = scmp.ne.s32.totalorder %s400, %s402
      %p406 = scmp.eq.s32.totalorder %s32, 0
      %p407 = por %p405, %p406
      %p408 = scmp.ne.s32.totalorder %s400, %s402
      %p409 = scmp.eq.s32.totalorder %s37, 2
      %p410 = por %p408, %p409
      %p411 = scmp.ne.s32.totalorder %s402, %s403
      %p412 = scmp.eq.s32.totalorder %s37, 0
      %p413 = por %p411, %p412
      %p414 = scmp.ne.s32.totalorder %s402, %s403
      %p415 = scmp.eq.s32.totalorder %s38, 2
      %p416 = por %p414, %p415
      %p418 = scmp.ne.s32.totalorder %s403, %s417
      %p419 = scmp.eq.s32.totalorder %s38, 0
      %p420 = por %p418, %p419
      %s422 = sadd.s32 %s421, 1
      %p425 = scmp.eq.s32.totalorder %s32, 2
      %p426 = scmp.ne.s32.totalorder %s421, %s423
      %p427 = scmp.eq.s32.totalorder %s32, 0
      %p428 = por %p426, %p427
      %p429 = scmp.ne.s32.totalorder %s421, %s423
      %p430 = scmp.eq.s32.totalorder %s37, 2
      %p431 = por %p429, %p430
      %p432 = scmp.ne.s32.totalorder %s423, %s424
      %p433 = scmp.eq.s32.totalorder %s37, 0
      %p434 = por %p432, %p433
      %p435 = scmp.ne.s32.totalorder %s423, %s424
      %p436 = scmp.eq.s32.totalorder %s38, 2
      %p437 = por %p435, %p436
      %p439 = scmp.ne.s32.totalorder %s424, %s438
      %p440 = scmp.eq.s32.totalorder %s38, 0
      %p441 = por %p439, %p440
      %s443 = sadd.s32 %s442, 1
      %p446 = scmp.eq.s32.totalorder %s32, 2
      %p447 = scmp.ne.s32.totalorder %s442, %s444
      %p448 = scmp.eq.s32.totalorder %s32, 0
      %p449 = por %p447, %p448
      %p450 = scmp.ne.s32.totalorder %s442, %s444
      %p451 = scmp.eq.s32.totalorder %s37, 2
      %p452 = por %p450, %p451
      %p453 = scmp.ne.s32.totalorder %s444, %s445
      %p454 = scmp.eq.s32.totalorder %s37, 0
      %p455 = por %p453, %p454
      %p456 = scmp.ne.s32.totalorder %s444, %s445
      %p457 = scmp.eq.s32.totalorder %s38, 2
      %p458 = por %p456, %p457
      %p460 = scmp.ne.s32.totalorder %s445, %s459
      %p461 = scmp.eq.s32.totalorder %s38, 0
      %p462 = por %p460, %p461
      %s464 = sadd.s32 %s463, 1
      %p467 = scmp.eq.s32.totalorder %s32, 2
      %p468 = scmp.ne.s32.totalorder %s463, %s465
      %p469 = scmp.eq.s32.totalorder %s32, 0
      %p470 = por %p468, %p469
      %p471 = scmp.ne.s32.totalorder %s463, %s465
      %p472 = scmp.eq.s32.totalorder %s37, 2
      %p473 = por %p471, %p472
      %p474 = scmp.ne.s32.totalorder %s465, %s466
      %p475 = scmp.eq.s32.totalorder %s37, 0
      %p476 = por %p474, %p475
      %p477 = scmp.ne.s32.totalorder %s465, %s466
      %p478 = scmp.eq.s32.totalorder %s38, 2
      %p479 = por %p477, %p478
      %p481 = scmp.ne.s32.totalorder %s466, %s480
      %p482 = scmp.eq.s32.totalorder %s38, 0
      %p483 = por %p481, %p482
      %p484 = scmp.le.s32.totalorder 1, %s32
      %p485 = scmp.lt.s32.totalorder %s32, 4
      %p486 = pnand %p484, %p485
      %p487 = pneg %p486
      // Predicated region
      $region9: #{tpu_custom_call.1} parent=5 // pred_check
        _
      $region10: #{tpu_custom_call.1} parent=5 // pred_check_branch
        %489 = sbr.rel (%p486) target = $region12
      $region11: #{tpu_custom_call.1} parent=5 // pred_region
        %s490 = ssub.s32 %s32, 1
        // Predicated region
        $region13: #{tpu_custom_call.1} parent=11 // pred_check
          %p491 = pneg %p53
        $region14: #{tpu_custom_call.1} parent=11 // pred_check_branch
          %493 = sbr.rel (%p491) target = $region16
        $region15: #{tpu_custom_call.1} parent=11 // pred_region
          %s495 = ssub.s32 128, 128
          %496 = vsyncadd [#allocation4], %s495
          %s497 = sshll.u32 [#allocation3], 4
          %s498 = int_to_ptr.vmem [resolvable:$true] %s497
          %503 = dma.hbm_to_vmem [thread:$0]  %s0, 128, %s498, [#allocation4], 64, 64, 4
        $region16: #{tpu_custom_call.1} parent=11 // pred_fallthru
          _
        // Predicated region
        $region17: #{tpu_custom_call.1} parent=11 // pred_check
          %p504 = pneg %p74
        $region18: #{tpu_custom_call.1} parent=11 // pred_check_branch
          %506 = sbr.rel (%p504) target = $region20
        $region19: #{tpu_custom_call.1} parent=11 // pred_region
          %s508 = ssub.s32 256, 256
          %509 = vsyncadd [#allocation7], %s508
          %s510 = sshll.u32 [#allocation6], 4
          %s511 = int_to_ptr.vmem [resolvable:$true] %s510
          %516 = dma.hbm_to_vmem [thread:$0]  %s1, 256, %s511, [#allocation7], 128, 128, 8
        $region20: #{tpu_custom_call.1} parent=11 // pred_fallthru
          _
        // Predicated region
        $region21: #{tpu_custom_call.1} parent=11 // pred_check
          %p517 = pneg %p329
        $region22: #{tpu_custom_call.1} parent=11 // pred_check_branch
          %519 = sbr.rel (%p517) target = $region24
        $region23: #{tpu_custom_call.1} parent=11 // pred_region
          %s521 = ssub.s32 256, 256
          %522 = vsyncadd [#allocation7], %s521
          %s523 = sshll.u32 [#allocation17], 4
          %s524 = int_to_ptr.vmem [resolvable:$true] %s523
          %529 = dma.hbm_to_vmem [thread:$0]  %s11, 256, %s524, [#allocation7], 128, 128, 8
        $region24: #{tpu_custom_call.1} parent=11 // pred_fallthru
          _
        // Predicated region
        $region25: #{tpu_custom_call.1} parent=11 // pred_check
          %p530 = pneg %p350
        $region26: #{tpu_custom_call.1} parent=11 // pred_check_branch
          %532 = sbr.rel (%p530) target = $region28
        $region27: #{tpu_custom_call.1} parent=11 // pred_region
          %s534 = ssub.s32 2048, 2048
          %535 = vsyncadd [#allocation19], %s534
          %s536 = sshll.u32 [#allocation18], 4
          %s537 = int_to_ptr.vmem [resolvable:$true] %s536
          %542 = dma.hbm_to_vmem [thread:$0]  %s12, 2048, %s537, [#allocation19], 64, 64, 4
        $region28: #{tpu_custom_call.1} parent=11 // pred_fallthru
          _
        // Predicated region
        $region29: #{tpu_custom_call.1} parent=11 // pred_check
          %p543 = pneg %p371
        $region30: #{tpu_custom_call.1} parent=11 // pred_check_branch
          %545 = sbr.rel (%p543) target = $region32
        $region31: #{tpu_custom_call.1} parent=11 // pred_region
          %s547 = ssub.s32 16, 16
          %548 = vsyncadd [#allocation19], %s547
          %s550 = sshll.u32 [#allocation20], 4
          %s551 = int_to_ptr.vmem [resolvable:$true] %s550
          %553 = dma.hbm_to_vmem [thread:$0]  %s13, 16, %s551, [#allocation19]
        $region32: #{tpu_custom_call.1} parent=11 // pred_fallthru
          _
        // Predicated region
        $region33: #{tpu_custom_call.1} parent=11 // pred_check
          %p554 = pneg %p392
        $region34: #{tpu_custom_call.1} parent=11 // pred_check_branch
          %556 = sbr.rel (%p554) target = $region36
        $region35: #{tpu_custom_call.1} parent=11 // pred_region
          %s558 = ssub.s32 128, 128
          %559 = vsyncadd [#allocation22], %s558
          %s561 = sshll.u32 [#allocation21], 4
          %s562 = int_to_ptr.vmem [resolvable:$true] %s561
          %564 = dma.hbm_to_vmem [thread:$0]  %s14, 128, %s562, [#allocation22]
        $region36: #{tpu_custom_call.1} parent=11 // pred_fallthru
          _
        // Predicated region
        $region37: #{tpu_custom_call.1} parent=11 // pred_check
          %p565 = pneg %p413
        $region38: #{tpu_custom_call.1} parent=11 // pred_check_branch
          %567 = sbr.rel (%p565) target = $region40
        $region39: #{tpu_custom_call.1} parent=11 // pred_region
          %s569 = ssub.s32 2048, 2048
          %570 = vsyncadd [#allocation22], %s569
          %s571 = sshll.u32 [#allocation23], 4
          %s572 = int_to_ptr.vmem [resolvable:$true] %s571
          %577 = dma.hbm_to_vmem [thread:$0]  %s15, 2048, %s572, [#allocation22], 128, 128, 8
        $region40: #{tpu_custom_call.1} parent=11 // pred_fallthru
          _
        // Predicated region
        $region41: #{tpu_custom_call.1} parent=11 // pred_check
          %p578 = pneg %p434
        $region42: #{tpu_custom_call.1} parent=11 // pred_check_branch
          %580 = sbr.rel (%p578) target = $region44
        $region43: #{tpu_custom_call.1} parent=11 // pred_region
          %s582 = ssub.s32 16, 16
          %583 = vsyncadd [#allocation25], %s582
          %s585 = sshll.u32 [#allocation24], 4
          %s586 = int_to_ptr.vmem [resolvable:$true] %s585
          %588 = dma.hbm_to_vmem [thread:$0]  %s16, 16, %s586, [#allocation25]
        $region44: #{tpu_custom_call.1} parent=11 // pred_fallthru
          _
      $region12: #{tpu_custom_call.1} parent=5 // pred_fallthru
        _
      %p589 = scmp.lt.s32.totalorder %s32, 3
      // Predicated region
      $region45: #{tpu_custom_call.1} parent=5 // pred_check
        %p590 = pneg %p589
      $region46: #{tpu_custom_call.1} parent=5 // pred_check_branch
        %592 = sbr.rel (%p590) target = $region48
      $region47: #{tpu_custom_call.1} parent=5 // pred_region
        // Predicated region
        $region49: #{tpu_custom_call.1} parent=47 // pred_check
          %p593 = pneg %p94
        $region50: #{tpu_custom_call.1} parent=47 // pred_check_branch
          %595 = sbr.rel (%p593) target = $region52
        $region51: #{tpu_custom_call.1} parent=47 // pred_region
          %s596 = sand.u32 %s32, 1
          %s597 = scalar_lea.sflag [#allocation4], %s596
          %s598 = sand.u32 %s84, 1
          %s599 = smul.addr %s598, 16
          %s600 = scalar_lea.vmem [#allocation8], %s599
          %s602 = ssub.s32 256, 256
          %603 = vsyncadd %s597, %s602
          %s604 = smul.addr %s32, 2
          %s605 = smul.addr %s604, 128
          %s606 = scalar_lea.hbm %s2, %s605
          %s607 = sshll.u32 %s600, 4
          %s608 = int_to_ptr.vmem [resolvable:$true] %s607
          %613 = dma.hbm_to_vmem [thread:$0]  %s606, 256, %s608, %s597, 128, 128, 8
        $region52: #{tpu_custom_call.1} parent=47 // pred_fallthru
          _
        // Predicated region
        $region53: #{tpu_custom_call.1} parent=47 // pred_check
          %p614 = pneg %p120
        $region54: #{tpu_custom_call.1} parent=47 // pred_check_branch
          %616 = sbr.rel (%p614) target = $region56
        $region55: #{tpu_custom_call.1} parent=47 // pred_region
          %s617 = sand.u32 %s32, 1
          %s618 = scalar_lea.sflag [#allocation4], %s617
          %s619 = sand.u32 %s110, 1
          %s620 = smul.addr %s619, 64
          %s621 = scalar_lea.vmem [#allocation9], %s620
          %s623 = ssub.s32 1024, 1024
          %624 = vsyncadd %s618, %s623
          %s625 = smul.addr %s32, 16
          %s626 = smul.addr %s625, 64
          %s627 = scalar_lea.hbm %s3, %s626
          %s628 = sshll.u32 %s621, 4
          %s629 = int_to_ptr.vmem [resolvable:$true] %s628
          %634 = dma.hbm_to_vmem [thread:$0]  %s627, 1024, %s629, %s618, 64, 64, 4
        $region56: #{tpu_custom_call.1} parent=47 // pred_fallthru
          _
        // Predicated region
        $region57: #{tpu_custom_call.1} parent=47 // pred_check
          %p635 = pneg %p146
        $region58: #{tpu_custom_call.1} parent=47 // pred_check_branch
          %637 = sbr.rel (%p635) target = $region60
        $region59: #{tpu_custom_call.1} parent=47 // pred_region
          %s638 = sand.u32 %s32, 1
          %s639 = scalar_lea.sflag [#allocation4], %s638
          %s640 = sand.u32 %s136, 1
          %s641 = scalar_lea.vmem [#allocation10], %s640
          %s643 = ssub.s32 16, 16
          %644 = vsyncadd %s639, %s643
          %s645 = smul.addr %s32, 16
          %s646 = scalar_lea.hbm %s4, %s645
          %s648 = sshll.u32 %s641, 4
          %s649 = int_to_ptr.vmem [resolvable:$true] %s648
          %651 = dma.hbm_to_vmem [thread:$0]  %s646, 16, %s649, %s639
        $region60: #{tpu_custom_call.1} parent=47 // pred_fallthru
          _
        // Predicated region
        $region61: #{tpu_custom_call.1} parent=47 // pred_check
          %p652 = pneg %p172
        $region62: #{tpu_custom_call.1} parent=47 // pred_check_branch
          %654 = sbr.rel (%p652) target = $region64
        $region63: #{tpu_custom_call.1} parent=47 // pred_region
          %s655 = sand.u32 %s32, 1
          %s656 = scalar_lea.sflag [#allocation4], %s655
          %s657 = sand.u32 %s162, 1
          %s658 = smul.addr %s657, 64
          %s659 = scalar_lea.vmem [#allocation11], %s658
          %s661 = ssub.s32 1024, 1024
          %662 = vsyncadd %s656, %s661
          %s663 = smul.addr %s32, 16
          %s664 = smul.addr %s663, 64
          %s665 = scalar_lea.hbm %s5, %s664
          %s666 = sshll.u32 %s659, 4
          %s667 = int_to_ptr.vmem [resolvable:$true] %s666
          %672 = dma.hbm_to_vmem [thread:$0]  %s665, 1024, %s667, %s656, 64, 64, 4
        $region64: #{tpu_custom_call.1} parent=47 // pred_fallthru
          _
        // Predicated region
        $region65: #{tpu_custom_call.1} parent=47 // pred_check
          %p673 = pneg %p198
        $region66: #{tpu_custom_call.1} parent=47 // pred_check_branch
          %675 = sbr.rel (%p673) target = $region68
        $region67: #{tpu_custom_call.1} parent=47 // pred_region
          %s676 = sand.u32 %s32, 1
          %s677 = scalar_lea.sflag [#allocation4], %s676
          %s678 = sand.u32 %s188, 1
          %s679 = scalar_lea.vmem [#allocation12], %s678
          %s681 = ssub.s32 16, 16
          %682 = vsyncadd %s677, %s681
          %s683 = smul.addr %s32, 16
          %s684 = scalar_lea.hbm %s6, %s683
          %s686 = sshll.u32 %s679, 4
          %s687 = int_to_ptr.vmem [resolvable:$true] %s686
          %689 = dma.hbm_to_vmem [thread:$0]  %s684, 16, %s687, %s677
        $region68: #{tpu_custom_call.1} parent=47 // pred_fallthru
          _
        // Predicated region
        $region69: #{tpu_custom_call.1} parent=47 // pred_check
          %p690 = pneg %p224
        $region70: #{tpu_custom_call.1} parent=47 // pred_check_branch
          %692 = sbr.rel (%p690) target = $region72
        $region71: #{tpu_custom_call.1} parent=47 // pred_region
          %s693 = sand.u32 %s32, 1
          %s694 = scalar_lea.sflag [#allocation4], %s693
          %s695 = sand.u32 %s214, 1
          %s696 = scalar_lea.vmem [#allocation13], %s695
          %s698 = ssub.s32 16, 16
          %699 = vsyncadd %s694, %s698
          %s700 = smul.addr %s32, 16
          %s701 = scalar_lea.hbm %s7, %s700
          %s703 = sshll.u32 %s696, 4
          %s704 = int_to_ptr.vmem [resolvable:$true] %s703
          %706 = dma.hbm_to_vmem [thread:$0]  %s701, 16, %s704, %s694
        $region72: #{tpu_custom_call.1} parent=47 // pred_fallthru
          _
        // Predicated region
        $region73: #{tpu_custom_call.1} parent=47 // pred_check
          %p707 = pneg %p250
        $region74: #{tpu_custom_call.1} parent=47 // pred_check_branch
          %709 = sbr.rel (%p707) target = $region76
        $region75: #{tpu_custom_call.1} parent=47 // pred_region
          %s710 = sand.u32 %s32, 1
          %s711 = scalar_lea.sflag [#allocation4], %s710
          %s712 = sand.u32 %s240, 1
          %s713 = scalar_lea.vmem [#allocation14], %s712
          %s715 = ssub.s32 16, 16
          %716 = vsyncadd %s711, %s715
          %s717 = smul.addr %s32, 16
          %s718 = scalar_lea.hbm %s8, %s717
          %s720 = sshll.u32 %s713, 4
          %s721 = int_to_ptr.vmem [resolvable:$true] %s720
          %723 = dma.hbm_to_vmem [thread:$0]  %s718, 16, %s721, %s711
        $region76: #{tpu_custom_call.1} parent=47 // pred_fallthru
          _
        // Predicated region
        $region77: #{tpu_custom_call.1} parent=47 // pred_check
          %p724 = pneg %p276
        $region78: #{tpu_custom_call.1} parent=47 // pred_check_branch
          %726 = sbr.rel (%p724) target = $region80
        $region79: #{tpu_custom_call.1} parent=47 // pred_region
          %s727 = sand.u32 %s32, 1
          %s728 = scalar_lea.sflag [#allocation4], %s727
          %s729 = sand.u32 %s266, 1
          %s730 = scalar_lea.vmem [#allocation15], %s729
          %s732 = ssub.s32 16, 16
          %733 = vsyncadd %s728, %s732
          %s734 = smul.addr %s32, 16
          %s735 = scalar_lea.hbm %s9, %s734
          %s737 = sshll.u32 %s730, 4
          %s738 = int_to_ptr.vmem [resolvable:$true] %s737
          %740 = dma.hbm_to_vmem [thread:$0]  %s735, 16, %s738, %s728
        $region80: #{tpu_custom_call.1} parent=47 // pred_fallthru
          _
        // Predicated region
        $region81: #{tpu_custom_call.1} parent=47 // pred_check
          %p741 = pneg %p302
        $region82: #{tpu_custom_call.1} parent=47 // pred_check_branch
          %743 = sbr.rel (%p741) target = $region84
        $region83: #{tpu_custom_call.1} parent=47 // pred_region
          %s744 = sand.u32 %s32, 1
          %s745 = scalar_lea.sflag [#allocation4], %s744
          %s746 = sand.u32 %s292, 1
          %s747 = scalar_lea.vmem [#allocation16], %s746
          %s749 = ssub.s32 16, 16
          %750 = vsyncadd %s745, %s749
          %s751 = smul.addr %s32, 16
          %s752 = scalar_lea.hbm %s10, %s751
          %s754 = sshll.u32 %s747, 4
          %s755 = int_to_ptr.vmem [resolvable:$true] %s754
          %757 = dma.hbm_to_vmem [thread:$0]  %s752, 16, %s755, %s745
        $region84: #{tpu_custom_call.1} parent=47 // pred_fallthru
          _
      $region48: #{tpu_custom_call.1} parent=5 // pred_fallthru
        _
      %p758 = scmp.le.s32.totalorder 1, %s32
      %p759 = scmp.lt.s32.totalorder %s32, 4
      %p760 = pnand %p758, %p759
      %p761 = pneg %p760
      // Predicated region
      $region85: #{tpu_custom_call.1} parent=5 // pred_check
        _
      $region86: #{tpu_custom_call.1} parent=5 // pred_check_branch
        %763 = sbr.rel (%p760) target = $region88
      $region87: #{tpu_custom_call.1} parent=5 // pred_region
        %s764 = ssub.s32 %s32, 1
        // Predicated region
        $region89: #{tpu_custom_call.1} parent=87 // pred_check
          %p765 = pneg %p53
        $region90: #{tpu_custom_call.1} parent=87 // pred_check_branch
          %767 = sbr.rel (%p765) target = $region92
        $region91: #{tpu_custom_call.1} parent=87 // pred_region
          %768 = dma.done [#allocation4], 128
        $region92: #{tpu_custom_call.1} parent=87 // pred_fallthru
          _
        // Predicated region
        $region93: #{tpu_custom_call.1} parent=87 // pred_check
          %p769 = pneg %p74
        $region94: #{tpu_custom_call.1} parent=87 // pred_check_branch
          %771 = sbr.rel (%p769) target = $region96
        $region95: #{tpu_custom_call.1} parent=87 // pred_region
          %772 = dma.done [#allocation7], 256
        $region96: #{tpu_custom_call.1} parent=87 // pred_fallthru
          _
        %s773 = sand.u32 %s37, 1
        %s774 = scalar_lea.sflag [#allocation4], %s773
        %s775 = sand.u32 %s87, 1
        %s776 = smul.addr %s775, 16
        %s777 = scalar_lea.vmem [#allocation8], %s776
        // Predicated region
        $region97: #{tpu_custom_call.1} parent=87 // pred_check
          %p778 = pneg %p100
        $region98: #{tpu_custom_call.1} parent=87 // pred_check_branch
          %780 = sbr.rel (%p778) target = $region100
        $region99: #{tpu_custom_call.1} parent=87 // pred_region
          %781 = dma.done %s774, 256
        $region100: #{tpu_custom_call.1} parent=87 // pred_fallthru
          _
        %s782 = sand.u32 %s37, 1
        %s783 = scalar_lea.sflag [#allocation4], %s782
        %s784 = sand.u32 %s113, 1
        %s785 = smul.addr %s784, 64
        %s786 = scalar_lea.vmem [#allocation9], %s785
        // Predicated region
        $region101: #{tpu_custom_call.1} parent=87 // pred_check
          %p787 = pneg %p126
        $region102: #{tpu_custom_call.1} parent=87 // pred_check_branch
          %789 = sbr.rel (%p787) target = $region104
        $region103: #{tpu_custom_call.1} parent=87 // pred_region
          %790 = dma.done %s783, 1024
        $region104: #{tpu_custom_call.1} parent=87 // pred_fallthru
          _
        %s791 = sand.u32 %s37, 1
        %s792 = scalar_lea.sflag [#allocation4], %s791
        %s793 = sand.u32 %s139, 1
        %s794 = scalar_lea.vmem [#allocation10], %s793
        // Predicated region
        $region105: #{tpu_custom_call.1} parent=87 // pred_check
          %p795 = pneg %p152
        $region106: #{tpu_custom_call.1} parent=87 // pred_check_branch
          %797 = sbr.rel (%p795) target = $region108
        $region107: #{tpu_custom_call.1} parent=87 // pred_region
          %798 = dma.done %s792, 16
        $region108: #{tpu_custom_call.1} parent=87 // pred_fallthru
          _
        %s799 = sand.u32 %s37, 1
        %s800 = scalar_lea.sflag [#allocation4], %s799
        %s801 = sand.u32 %s165, 1
        %s802 = smul.addr %s801, 64
        %s803 = scalar_lea.vmem [#allocation11], %s802
        // Predicated region
        $region109: #{tpu_custom_call.1} parent=87 // pred_check
          %p804 = pneg %p178
        $region110: #{tpu_custom_call.1} parent=87 // pred_check_branch
          %806 = sbr.rel (%p804) target = $region112
        $region111: #{tpu_custom_call.1} parent=87 // pred_region
          %807 = dma.done %s800, 1024
        $region112: #{tpu_custom_call.1} parent=87 // pred_fallthru
          _
        %s808 = sand.u32 %s37, 1
        %s809 = scalar_lea.sflag [#allocation4], %s808
        %s810 = sand.u32 %s191, 1
        %s811 = scalar_lea.vmem [#allocation12], %s810
        // Predicated region
        $region113: #{tpu_custom_call.1} parent=87 // pred_check
          %p812 = pneg %p204
        $region114: #{tpu_custom_call.1} parent=87 // pred_check_branch
          %814 = sbr.rel (%p812) target = $region116
        $region115: #{tpu_custom_call.1} parent=87 // pred_region
          %815 = dma.done %s809, 16
        $region116: #{tpu_custom_call.1} parent=87 // pred_fallthru
          _
        %s816 = sand.u32 %s37, 1
        %s817 = scalar_lea.sflag [#allocation4], %s816
        %s818 = sand.u32 %s217, 1
        %s819 = scalar_lea.vmem [#allocation13], %s818
        // Predicated region
        $region117: #{tpu_custom_call.1} parent=87 // pred_check
          %p820 = pneg %p230
        $region118: #{tpu_custom_call.1} parent=87 // pred_check_branch
          %822 = sbr.rel (%p820) target = $region120
        $region119: #{tpu_custom_call.1} parent=87 // pred_region
          %823 = dma.done %s817, 16
        $region120: #{tpu_custom_call.1} parent=87 // pred_fallthru
          _
        %s824 = sand.u32 %s37, 1
        %s825 = scalar_lea.sflag [#allocation4], %s824
        %s826 = sand.u32 %s243, 1
        %s827 = scalar_lea.vmem [#allocation14], %s826
        // Predicated region
        $region121: #{tpu_custom_call.1} parent=87 // pred_check
          %p828 = pneg %p256
        $region122: #{tpu_custom_call.1} parent=87 // pred_check_branch
          %830 = sbr.rel (%p828) target = $region124
        $region123: #{tpu_custom_call.1} parent=87 // pred_region
          %831 = dma.done %s825, 16
        $region124: #{tpu_custom_call.1} parent=87 // pred_fallthru
          _
        %s832 = sand.u32 %s37, 1
        %s833 = scalar_lea.sflag [#allocation4], %s832
        %s834 = sand.u32 %s269, 1
        %s835 = scalar_lea.vmem [#allocation15], %s834
        // Predicated region
        $region125: #{tpu_custom_call.1} parent=87 // pred_check
          %p836 = pneg %p282
        $region126: #{tpu_custom_call.1} parent=87 // pred_check_branch
          %838 = sbr.rel (%p836) target = $region128
        $region127: #{tpu_custom_call.1} parent=87 // pred_region
          %839 = dma.done %s833, 16
        $region128: #{tpu_custom_call.1} parent=87 // pred_fallthru
          _
        %s840 = sand.u32 %s37, 1
        %s841 = scalar_lea.sflag [#allocation4], %s840
        %s842 = sand.u32 %s295, 1
        %s843 = scalar_lea.vmem [#allocation16], %s842
        // Predicated region
        $region129: #{tpu_custom_call.1} parent=87 // pred_check
          %p844 = pneg %p308
        $region130: #{tpu_custom_call.1} parent=87 // pred_check_branch
          %846 = sbr.rel (%p844) target = $region132
        $region131: #{tpu_custom_call.1} parent=87 // pred_region
          %847 = dma.done %s841, 16
        $region132: #{tpu_custom_call.1} parent=87 // pred_fallthru
          _
        // Predicated region
        $region133: #{tpu_custom_call.1} parent=87 // pred_check
          %p848 = pneg %p329
        $region134: #{tpu_custom_call.1} parent=87 // pred_check_branch
          %850 = sbr.rel (%p848) target = $region136
        $region135: #{tpu_custom_call.1} parent=87 // pred_region
          %851 = dma.done [#allocation7], 256
        $region136: #{tpu_custom_call.1} parent=87 // pred_fallthru
          _
        // Predicated region
        $region137: #{tpu_custom_call.1} parent=87 // pred_check
          %p852 = pneg %p350
        $region138: #{tpu_custom_call.1} parent=87 // pred_check_branch
          %854 = sbr.rel (%p852) target = $region140
        $region139: #{tpu_custom_call.1} parent=87 // pred_region
          %855 = dma.done [#allocation19], 2048
        $region140: #{tpu_custom_call.1} parent=87 // pred_fallthru
          _
        // Predicated region
        $region141: #{tpu_custom_call.1} parent=87 // pred_check
          %p856 = pneg %p371
        $region142: #{tpu_custom_call.1} parent=87 // pred_check_branch
          %858 = sbr.rel (%p856) target = $region144
        $region143: #{tpu_custom_call.1} parent=87 // pred_region
          %859 = dma.done [#allocation19], 16
        $region144: #{tpu_custom_call.1} parent=87 // pred_fallthru
          _
        // Predicated region
        $region145: #{tpu_custom_call.1} parent=87 // pred_check
          %p860 = pneg %p392
        $region146: #{tpu_custom_call.1} parent=87 // pred_check_branch
          %862 = sbr.rel (%p860) target = $region148
        $region147: #{tpu_custom_call.1} parent=87 // pred_region
          %863 = dma.done [#allocation22], 128
        $region148: #{tpu_custom_call.1} parent=87 // pred_fallthru
          _
        // Predicated region
        $region149: #{tpu_custom_call.1} parent=87 // pred_check
          %p864 = pneg %p413
        $region150: #{tpu_custom_call.1} parent=87 // pred_check_branch
          %866 = sbr.rel (%p864) target = $region152
        $region151: #{tpu_custom_call.1} parent=87 // pred_region
          %867 = dma.done [#allocation22], 2048
        $region152: #{tpu_custom_call.1} parent=87 // pred_fallthru
          _
        // Predicated region
        $region153: #{tpu_custom_call.1} parent=87 // pred_check
          %p868 = pneg %p434
        $region154: #{tpu_custom_call.1} parent=87 // pred_check_branch
          %870 = sbr.rel (%p868) target = $region156
        $region155: #{tpu_custom_call.1} parent=87 // pred_region
          %871 = dma.done [#allocation25], 16
        $region156: #{tpu_custom_call.1} parent=87 // pred_fallthru
          _
        %p872 = pneg %p53
        %p873 = pneg %p50
        %p874 = pneg %p74
        %p875 = pneg %p71
        %s876 = sand.u32 %s37, 1
        %s877 = scalar_lea.sflag [#allocation4], %s876
        %s878 = sand.u32 %s87, 1
        %s879 = smul.addr %s878, 16
        %s880 = scalar_lea.vmem [#allocation8], %s879
        %p881 = pneg %p100
        %p882 = pneg %p97
        %s883 = sand.u32 %s37, 1
        %s884 = scalar_lea.sflag [#allocation4], %s883
        %s885 = sand.u32 %s113, 1
        %s886 = smul.addr %s885, 64
        %s887 = scalar_lea.vmem [#allocation9], %s886
        %p888 = pneg %p126
        %p889 = pneg %p123
        %s890 = sand.u32 %s37, 1
        %s891 = scalar_lea.sflag [#allocation4], %s890
        %s892 = sand.u32 %s139, 1
        %s893 = scalar_lea.vmem [#allocation10], %s892
        %p894 = pneg %p152
        %p895 = pneg %p149
        %s896 = sand.u32 %s37, 1
        %s897 = scalar_lea.sflag [#allocation4], %s896
        %s898 = sand.u32 %s165, 1
        %s899 = smul.addr %s898, 64
        %s900 = scalar_lea.vmem [#allocation11], %s899
        %p901 = pneg %p178
        %p902 = pneg %p175
        %s903 = sand.u32 %s37, 1
        %s904 = scalar_lea.sflag [#allocation4], %s903
        %s905 = sand.u32 %s191, 1
        %s906 = scalar_lea.vmem [#allocation12], %s905
        %p907 = pneg %p204
        %p908 = pneg %p201
        %s909 = sand.u32 %s37, 1
        %s910 = scalar_lea.sflag [#allocation4], %s909
        %s911 = sand.u32 %s217, 1
        %s912 = scalar_lea.vmem [#allocation13], %s911
        %p913 = pneg %p230
        %p914 = pneg %p227
        %s915 = sand.u32 %s37, 1
        %s916 = scalar_lea.sflag [#allocation4], %s915
        %s917 = sand.u32 %s243, 1
        %s918 = scalar_lea.vmem [#allocation14], %s917
        %p919 = pneg %p256
        %p920 = pneg %p253
        %s921 = sand.u32 %s37, 1
        %s922 = scalar_lea.sflag [#allocation4], %s921
        %s923 = sand.u32 %s269, 1
        %s924 = scalar_lea.vmem [#allocation15], %s923
        %p925 = pneg %p282
        %p926 = pneg %p279
        %s927 = sand.u32 %s37, 1
        %s928 = scalar_lea.sflag [#allocation4], %s927
        %s929 = sand.u32 %s295, 1
        %s930 = scalar_lea.vmem [#allocation16], %s929
        %p931 = pneg %p308
        %p932 = pneg %p305
        %p933 = pneg %p329
        %p934 = pneg %p326
        %p935 = pneg %p350
        %p936 = pneg %p347
        %p937 = pneg %p371
        %p938 = pneg %p368
        %p939 = pneg %p392
        %p940 = pneg %p389
        %p941 = pneg %p413
        %p942 = pneg %p410
        %p943 = pneg %p434
        %p944 = pneg %p431
        %p945 = pneg %p455
        %p946 = pneg %p452
        %p947 = pneg %p476
        %p948 = pneg %p473
        %p950 = scmp.eq.s32.totalorder %s37, 0
        // Predicated region
        $region157: #{tpu_custom_call.1} parent=87 // pred_check
          %p951 = pneg %p950
        $region158: #{tpu_custom_call.1} parent=87 // pred_check_branch
          %953 = sbr.rel (%p951) target = $region160
        $region159: #{tpu_custom_call.1} parent=87 // pred_region
          %v954 = vld [vmem:[#allocation6] sm:$0xff]
          %v955 = vld [vmem:[#allocation6 + $0x8] sm:$0xff]
          %956 = vst [vmem:[#allocation26] sm:$0xff] %v954
          %957 = vst [vmem:[#allocation26 + $0x8] sm:$0xff] %v955
          %v958 = vld [vmem:[#allocation17] sm:$0xff]
          %v959 = vld [vmem:[#allocation17 + $0x8] sm:$0xff]
          %v960 = vld [vmem:[#allocation18] sm:$0xf]
          %v961 = vld [vmem:[#allocation18 + $0x4] sm:$0xf]
          %v962 = vld [vmem:[#allocation18 + $0x8] sm:$0xf]
          %v963 = vld [vmem:[#allocation18 + $0xc] sm:$0xf]
          %v964 = vld [vmem:[#allocation18 + $0x10] sm:$0xf]
          %v965 = vld [vmem:[#allocation18 + $0x14] sm:$0xf]
          %v966 = vld [vmem:[#allocation18 + $0x18] sm:$0xf]
          %v967 = vld [vmem:[#allocation18 + $0x1c] sm:$0xf]
          %v968 = vld [vmem:[#allocation18 + $0x20] sm:$0xf]
          %v969 = vld [vmem:[#allocation18 + $0x24] sm:$0xf]
          %v970 = vld [vmem:[#allocation18 + $0x28] sm:$0xf]
          %v971 = vld [vmem:[#allocation18 + $0x2c] sm:$0xf]
          %v972 = vld [vmem:[#allocation18 + $0x30] sm:$0xf]
          %v973 = vld [vmem:[#allocation18 + $0x34] sm:$0xf]
          %v974 = vld [vmem:[#allocation18 + $0x38] sm:$0xf]
          %v975 = vld [vmem:[#allocation18 + $0x3c] sm:$0xf]
          %v976 = vld [vmem:[#allocation18 + $0x40] sm:$0xf]
          %v977 = vld [vmem:[#allocation18 + $0x44] sm:$0xf]
          %v978 = vld [vmem:[#allocation18 + $0x48] sm:$0xf]
          %v979 = vld [vmem:[#allocation18 + $0x4c] sm:$0xf]
          %v980 = vld [vmem:[#allocation18 + $0x50] sm:$0xf]
          %v981 = vld [vmem:[#allocation18 + $0x54] sm:$0xf]
          %v982 = vld [vmem:[#allocation18 + $0x58] sm:$0xf]
          %v983 = vld [vmem:[#allocation18 + $0x5c] sm:$0xf]
          %v984 = vld [vmem:[#allocation18 + $0x60] sm:$0xf]
          %v985 = vld [vmem:[#allocation18 + $0x64] sm:$0xf]
          %v986 = vld [vmem:[#allocation18 + $0x68] sm:$0xf]
          %v987 = vld [vmem:[#allocation18 + $0x6c] sm:$0xf]
          %v988 = vld [vmem:[#allocation18 + $0x70] sm:$0xf]
          %v989 = vld [vmem:[#allocation18 + $0x74] sm:$0xf]
          %v990 = vld [vmem:[#allocation18 + $0x78] sm:$0xf]
          %v991 = vld [vmem:[#allocation18 + $0x7c] sm:$0xf]
          %v992 = vld [vmem:[#allocation20] sm:$0x1]
          %v994 = vlaneseq
          %v995 = vshrl.u32 %v994, 7
          %v996 = vsub.s32 0, %v995
          %v997 = vrot.slane %v992, %v996
          %v1001 = vunpack.c.l.b16 %v958
          %v1002 = vunpack.c.h.b16 %v958
          %v1003 = vunpack.c.l.b16 %v959
          %v1004 = vunpack.c.h.b16 %v959
          %v1005 = vpack.c.b16 %v1003, %v1001
          %v1006 = vpack.c.b16 %v1004, %v1002
          %v1041 = vunpack.c.l.b16 %v960
          %v1042 = vunpack.c.l.b16 %v961
          %v1043 = vunpack.c.l.b16 %v962
          %v1044 = vunpack.c.l.b16 %v963
          %v1045 = vunpack.c.l.b16 %v964
          %v1046 = vunpack.c.l.b16 %v965
          %v1047 = vunpack.c.l.b16 %v966
          %v1048 = vunpack.c.l.b16 %v967
          %v1049 = vunpack.c.l.b16 %v968
          %v1050 = vunpack.c.l.b16 %v969
          %v1051 = vunpack.c.l.b16 %v970
          %v1052 = vunpack.c.l.b16 %v971
          %v1053 = vunpack.c.l.b16 %v972
          %v1054 = vunpack.c.l.b16 %v973
          %v1055 = vunpack.c.l.b16 %v974
          %v1056 = vunpack.c.l.b16 %v975
          %v1057 = vunpack.c.l.b16 %v976
          %v1058 = vunpack.c.l.b16 %v977
          %v1059 = vunpack.c.l.b16 %v978
          %v1060 = vunpack.c.l.b16 %v979
          %v1061 = vunpack.c.l.b16 %v980
          %v1062 = vunpack.c.l.b16 %v981
          %v1063 = vunpack.c.l.b16 %v982
          %v1064 = vunpack.c.l.b16 %v983
          %v1065 = vunpack.c.l.b16 %v984
          %v1066 = vunpack.c.l.b16 %v985
          %v1067 = vunpack.c.l.b16 %v986
          %v1068 = vunpack.c.l.b16 %v987
          %v1069 = vunpack.c.l.b16 %v988
          %v1070 = vunpack.c.l.b16 %v989
          %v1071 = vunpack.c.l.b16 %v990
          %v1072 = vunpack.c.l.b16 %v991
          %v1073 = vpack.c.b16 %v1042, %v1041
          %v1074 = vpack.c.b16 %v1044, %v1043
          %v1075 = vpack.c.b16 %v1046, %v1045
          %v1076 = vpack.c.b16 %v1048, %v1047
          %v1077 = vpack.c.b16 %v1050, %v1049
          %v1078 = vpack.c.b16 %v1052, %v1051
          %v1079 = vpack.c.b16 %v1054, %v1053
          %v1080 = vpack.c.b16 %v1056, %v1055
          %v1081 = vpack.c.b16 %v1058, %v1057
          %v1082 = vpack.c.b16 %v1060, %v1059
          %v1083 = vpack.c.b16 %v1062, %v1061
          %v1084 = vpack.c.b16 %v1064, %v1063
          %v1085 = vpack.c.b16 %v1066, %v1065
          %v1086 = vpack.c.b16 %v1068, %v1067
          %v1087 = vpack.c.b16 %v1070, %v1069
          %v1088 = vpack.c.b16 %v1072, %v1071
          %1105 = vmatprep.subr.bf16.mxu0 0
          %1106 = vmatpush1.bf16.msra.mxu0 %v1073
          %1107 = vmatprep.subr.bf16.mxu0 0
          %1108 = vmatpush1.bf16.msra.mxu0 %v1074
          %1109 = vmatprep.subr.bf16.mxu0 0
          %1110 = vmatpush1.bf16.msra.mxu0 %v1075
          %1111 = vmatprep.subr.bf16.mxu0 0
          %1112 = vmatpush1.bf16.msra.mxu0 %v1076
          %1113 = vmatprep.subr.bf16.mxu0 0
          %1114 = vmatpush1.bf16.msra.mxu0 %v1077
          %1115 = vmatprep.subr.bf16.mxu0 0
          %1116 = vmatpush1.bf16.msra.mxu0 %v1078
          %1117 = vmatprep.subr.bf16.mxu0 0
          %1118 = vmatpush1.bf16.msra.mxu0 %v1079
          %1119 = vmatprep.subr.bf16.mxu0 0
          %1120 = vmatpush1.bf16.msra.mxu0 %v1080
          %1121 = vmatprep.subr.bf16.mxu0 0
          %1122 = vmatpush1.bf16.msra.mxu0 %v1081
          %1123 = vmatprep.subr.bf16.mxu0 0
          %1124 = vmatpush1.bf16.msra.mxu0 %v1082
          %1125 = vmatprep.subr.bf16.mxu0 0
          %1126 = vmatpush1.bf16.msra.mxu0 %v1083
          %1127 = vmatprep.subr.bf16.mxu0 0
          %1128 = vmatpush1.bf16.msra.mxu0 %v1084
          %1129 = vmatprep.subr.bf16.mxu0 0
          %1130 = vmatpush1.bf16.msra.mxu0 %v1085
          %1131 = vmatprep.subr.bf16.mxu0 0
          %1132 = vmatpush1.bf16.msra.mxu0 %v1086
          %1133 = vmatprep.subr.bf16.mxu0 0
          %1134 = vmatpush1.bf16.msra.mxu0 %v1087
          %1135 = vmatprep.subr.bf16.mxu0 0
          %1136 = vmatpush1.bf16.msra.mxu0 %v1088
          %1137 = vmatprep.mubr.bf16.mxu0 %v1006
          %1138 = vmatmul.mubr.bf16.gmra.mrb[0].mxu0 %v1005
          %v1139 = vpop.f32.mrb[0].mxu0
          %v1140 = vadd.f32 %v997, %v1139
          %v1141 = vpop.f32.mrb[0].mxu0
          %v1142 = vpop.f32.mrb[0].mxu0
          %v1143 = vadd.f32 %v997, %v1142
          %v1144 = vpop.f32.mrb[0].mxu0
          %1145 = vdwg.mxu0
          %1146 = vst [vmem:[#allocation2] sm:$0xff] %v1140
          %1147 = vst [vmem:[#allocation2 + $0x8] sm:$0xff] %v1143
          %1148 = vst [vmem:[#allocation27] sm:$0xff] 0.0
        $region160: #{tpu_custom_call.1} parent=87 // pred_fallthru
          _
        %v1149 = vld [vmem:[#allocation26] sm:$0xff]
        %v1150 = vld [vmem:[#allocation26 + $0x8] sm:$0xff]
        %v1151 = vld [vmem:[#allocation3] sm:$0xf]
        %v1152 = vld [vmem:[#allocation3 + $0x4] sm:$0xf]
        %v1153 = vpack.c.bf16 %v1150, %v1149
        %v1154 = vld [vmem:[%s777] sm:$0xff]
        %v1155 = vld [vmem:[%s777 + $0x8] sm:$0xff]
        %v1158 = vunpack.c.l.b16 %v1151
        %v1159 = vunpack.c.l.b16 %v1152
        %v1160 = vpack.c.b16 %v1159, %v1158
        %vm1161 = vcmask 130048
        %v1163 = vsel %vm1161, %v1160, 0
        %1165 = vmatprep.subr.bf16.mxu0 0
        %1166 = vmatpush1.bf16.msra.mxu0 %v1153
        %1167 = vmatprep.subr.bf16.mxu0 0
        %1168 = vmatpush1.bf16.msra.mxu0 0
        %1169 = vmatprep.subr.bf16.mxu0 0
        %1170 = vmatpush1.bf16.msra.mxu0 0
        %1171 = vmatprep.subr.bf16.mxu0 0
        %1172 = vmatpush1.bf16.msra.mxu0 0
        %1173 = vmatprep.subr.bf16.mxu0 0
        %1174 = vmatpush1.bf16.msra.mxu0 0
        %1175 = vmatprep.subr.bf16.mxu0 0
        %1176 = vmatpush1.bf16.msra.mxu0 0
        %1177 = vmatprep.subr.bf16.mxu0 0
        %1178 = vmatpush1.bf16.msra.mxu0 0
        %1179 = vmatprep.subr.bf16.mxu0 0
        %1180 = vmatpush1.bf16.msra.mxu0 0
        %1181 = vmatprep.subr.bf16.mxu0 0
        %1182 = vmatpush1.bf16.msra.mxu0 0
        %1183 = vmatprep.subr.bf16.mxu0 0
        %1184 = vmatpush1.bf16.msra.mxu0 0
        %1185 = vmatprep.subr.bf16.mxu0 0
        %1186 = vmatpush1.bf16.msra.mxu0 0
        %1187 = vmatprep.subr.bf16.mxu0 0
        %1188 = vmatpush1.bf16.msra.mxu0 0
        %1189 = vmatprep.subr.bf16.mxu0 0
        %1190 = vmatpush1.bf16.msra.mxu0 0
        %1191 = vmatprep.subr.bf16.mxu0 0
        %1192 = vmatpush1.bf16.msra.mxu0 0
        %1193 = vmatprep.subr.bf16.mxu0 0
        %1194 = vmatpush1.bf16.msra.mxu0 0
        %1195 = vmatprep.subr.bf16.mxu0 0
        %1196 = vmatpush1.bf16.msra.mxu0 0
        %1197 = vmatprep.mubr.bf16.mxu0 0
        %1198 = vmatmul.mubr.bf16.gmra.mrb[0].mxu0 %v1163
        %v1199 = vpop.f32.mrb[0].mxu0
        %v1200 = vadd.f32 %v1154, %v1199
        %v1201 = vpop.f32.mrb[0].mxu0
        %v1202 = vpop.f32.mrb[0].mxu0
        %v1203 = vadd.f32 %v1155, %v1202
        %v1204 = vpop.f32.mrb[0].mxu0
        %1205 = vdwg.mxu0
        %v1206 = vpack.c.bf16 %v1203, %v1200
        %v1207 = vld [vmem:[%s786] sm:$0xf]
        %v1208 = vld [vmem:[%s786 + $0x4] sm:$0xf]
        %v1209 = vld [vmem:[%s786 + $0x8] sm:$0xf]
        %v1210 = vld [vmem:[%s786 + $0xc] sm:$0xf]
        %v1211 = vld [vmem:[%s786 + $0x10] sm:$0xf]
        %v1212 = vld [vmem:[%s786 + $0x14] sm:$0xf]
        %v1213 = vld [vmem:[%s786 + $0x18] sm:$0xf]
        %v1214 = vld [vmem:[%s786 + $0x1c] sm:$0xf]
        %v1215 = vld [vmem:[%s786 + $0x20] sm:$0xf]
        %v1216 = vld [vmem:[%s786 + $0x24] sm:$0xf]
        %v1217 = vld [vmem:[%s786 + $0x28] sm:$0xf]
        %v1218 = vld [vmem:[%s786 + $0x2c] sm:$0xf]
        %v1219 = vld [vmem:[%s786 + $0x30] sm:$0xf]
        %v1220 = vld [vmem:[%s786 + $0x34] sm:$0xf]
        %v1221 = vld [vmem:[%s786 + $0x38] sm:$0xf]
        %v1222 = vld [vmem:[%s786 + $0x3c] sm:$0xf]
        %v1223 = vld [vmem:[%s794] sm:$0x1]
        %v1225 = vlaneseq
        %v1226 = vshrl.u32 %v1225, 7
        %v1227 = vsub.s32 0, %v1226
        %v1228 = vrot.slane %v1223, %v1227
        %v1246 = vunpack.c.l.b16 %v1207
        %v1247 = vunpack.c.l.b16 %v1208
        %v1248 = vunpack.c.l.b16 %v1209
        %v1249 = vunpack.c.l.b16 %v1210
        %v1250 = vunpack.c.l.b16 %v1211
        %v1251 = vunpack.c.l.b16 %v1212
        %v1252 = vunpack.c.l.b16 %v1213
        %v1253 = vunpack.c.l.b16 %v1214
        %v1254 = vunpack.c.l.b16 %v1215
        %v1255 = vunpack.c.l.b16 %v1216
        %v1256 = vunpack.c.l.b16 %v1217
        %v1257 = vunpack.c.l.b16 %v1218
        %v1258 = vunpack.c.l.b16 %v1219
        %v1259 = vunpack.c.l.b16 %v1220
        %v1260 = vunpack.c.l.b16 %v1221
        %v1261 = vunpack.c.l.b16 %v1222
        %v1262 = vpack.c.b16 %v1247, %v1246
        %v1263 = vpack.c.b16 %v1249, %v1248
        %v1264 = vpack.c.b16 %v1251, %v1250
        %v1265 = vpack.c.b16 %v1253, %v1252
        %v1266 = vpack.c.b16 %v1255, %v1254
        %v1267 = vpack.c.b16 %v1257, %v1256
        %v1268 = vpack.c.b16 %v1259, %v1258
        %v1269 = vpack.c.b16 %v1261, %v1260
        %1278 = vmatprep.subr.bf16.mxu0 0
        %1279 = vmatpush1.bf16.msra.mxu0 %v1262
        %1280 = vmatprep.subr.bf16.mxu0 0
        %1281 = vmatpush1.bf16.msra.mxu0 %v1263
        %1282 = vmatprep.subr.bf16.mxu0 0
        %1283 = vmatpush1.bf16.msra.mxu0 %v1264
        %1284 = vmatprep.subr.bf16.mxu0 0
        %1285 = vmatpush1.bf16.msra.mxu0 %v1265
        %1286 = vmatprep.subr.bf16.mxu0 0
        %1287 = vmatpush1.bf16.msra.mxu0 %v1266
        %1288 = vmatprep.subr.bf16.mxu0 0
        %1289 = vmatpush1.bf16.msra.mxu0 %v1267
        %1290 = vmatprep.subr.bf16.mxu0 0
        %1291 = vmatpush1.bf16.msra.mxu0 %v1268
        %1292 = vmatprep.subr.bf16.mxu0 0
        %1293 = vmatpush1.bf16.msra.mxu0 %v1269
        %1294 = vmatprep.subr.bf16.mxu0 0
        %1295 = vmatpush1.bf16.msra.mxu0 0
        %1296 = vmatprep.subr.bf16.mxu0 0
        %1297 = vmatpush1.bf16.msra.mxu0 0
        %1298 = vmatprep.subr.bf16.mxu0 0
        %1299 = vmatpush1.bf16.msra.mxu0 0
        %1300 = vmatprep.subr.bf16.mxu0 0
        %1301 = vmatpush1.bf16.msra.mxu0 0
        %1302 = vmatprep.subr.bf16.mxu0 0
        %1303 = vmatpush1.bf16.msra.mxu0 0
        %1304 = vmatprep.subr.bf16.mxu0 0
        %1305 = vmatpush1.bf16.msra.mxu0 0
        %1306 = vmatprep.subr.bf16.mxu0 0
        %1307 = vmatpush1.bf16.msra.mxu0 0
        %1308 = vmatprep.subr.bf16.mxu0 0
        %1309 = vmatpush1.bf16.msra.mxu0 0
        %1310 = vmatprep.mubr.bf16.mxu0 0
        %1311 = vmatmul.mubr.bf16.gmra.mrb[0].mxu0 %v1206
        %v1312 = vpop.f32.mrb[0].mxu0
        %v1313 = vadd.f32 %v1228, %v1312
        %v1314 = vpop.f32.mrb[0].mxu0
        %v1315 = vpop.f32.mrb[0].mxu0
        %v1316 = vadd.f32 %v1228, %v1315
        %v1317 = vpop.f32.mrb[0].mxu0
        %1318 = vdwg.mxu0
        %v1319 = vmax.f32 %v1313, 0.0
        %v1320 = vmax.f32 %v1316, 0.0
        %v1321 = vpack.c.bf16 %v1320, %v1319
        %v1322 = vld [vmem:[%s803] sm:$0xf]
        %v1323 = vld [vmem:[%s803 + $0x4] sm:$0xf]
        %v1324 = vld [vmem:[%s803 + $0x8] sm:$0xf]
        %v1325 = vld [vmem:[%s803 + $0xc] sm:$0xf]
        %v1326 = vld [vmem:[%s803 + $0x10] sm:$0xf]
        %v1327 = vld [vmem:[%s803 + $0x14] sm:$0xf]
        %v1328 = vld [vmem:[%s803 + $0x18] sm:$0xf]
        %v1329 = vld [vmem:[%s803 + $0x1c] sm:$0xf]
        %v1330 = vld [vmem:[%s803 + $0x20] sm:$0xf]
        %v1331 = vld [vmem:[%s803 + $0x24] sm:$0xf]
        %v1332 = vld [vmem:[%s803 + $0x28] sm:$0xf]
        %v1333 = vld [vmem:[%s803 + $0x2c] sm:$0xf]
        %v1334 = vld [vmem:[%s803 + $0x30] sm:$0xf]
        %v1335 = vld [vmem:[%s803 + $0x34] sm:$0xf]
        %v1336 = vld [vmem:[%s803 + $0x38] sm:$0xf]
        %v1337 = vld [vmem:[%s803 + $0x3c] sm:$0xf]
        %v1338 = vld [vmem:[%s811] sm:$0x1]
        %v1340 = vlaneseq
        %v1341 = vshrl.u32 %v1340, 7
        %v1342 = vsub.s32 0, %v1341
        %v1343 = vrot.slane %v1338, %v1342
        %v1361 = vunpack.c.l.b16 %v1322
        %v1362 = vunpack.c.l.b16 %v1323
        %v1363 = vunpack.c.l.b16 %v1324
        %v1364 = vunpack.c.l.b16 %v1325
        %v1365 = vunpack.c.l.b16 %v1326
        %v1366 = vunpack.c.l.b16 %v1327
        %v1367 = vunpack.c.l.b16 %v1328
        %v1368 = vunpack.c.l.b16 %v1329
        %v1369 = vunpack.c.l.b16 %v1330
        %v1370 = vunpack.c.l.b16 %v1331
        %v1371 = vunpack.c.l.b16 %v1332
        %v1372 = vunpack.c.l.b16 %v1333
        %v1373 = vunpack.c.l.b16 %v1334
        %v1374 = vunpack.c.l.b16 %v1335
        %v1375 = vunpack.c.l.b16 %v1336
        %v1376 = vunpack.c.l.b16 %v1337
        %v1377 = vpack.c.b16 %v1362, %v1361
        %v1378 = vpack.c.b16 %v1364, %v1363
        %v1379 = vpack.c.b16 %v1366, %v1365
        %v1380 = vpack.c.b16 %v1368, %v1367
        %v1381 = vpack.c.b16 %v1370, %v1369
        %v1382 = vpack.c.b16 %v1372, %v1371
        %v1383 = vpack.c.b16 %v1374, %v1373
        %v1384 = vpack.c.b16 %v1376, %v1375
        %1393 = vmatprep.subr.bf16.mxu0 0
        %1394 = vmatpush1.bf16.msra.mxu0 %v1377
        %1395 = vmatprep.subr.bf16.mxu0 0
        %1396 = vmatpush1.bf16.msra.mxu0 %v1378
        %1397 = vmatprep.subr.bf16.mxu0 0
        %1398 = vmatpush1.bf16.msra.mxu0 %v1379
        %1399 = vmatprep.subr.bf16.mxu0 0
        %1400 = vmatpush1.bf16.msra.mxu0 %v1380
        %1401 = vmatprep.subr.bf16.mxu0 0
        %1402 = vmatpush1.bf16.msra.mxu0 %v1381
        %1403 = vmatprep.subr.bf16.mxu0 0
        %1404 = vmatpush1.bf16.msra.mxu0 %v1382
        %1405 = vmatprep.subr.bf16.mxu0 0
        %1406 = vmatpush1.bf16.msra.mxu0 %v1383
        %1407 = vmatprep.subr.bf16.mxu0 0
        %1408 = vmatpush1.bf16.msra.mxu0 %v1384
        %1409 = vmatprep.subr.bf16.mxu0 0
        %1410 = vmatpush1.bf16.msra.mxu0 0
        %1411 = vmatprep.subr.bf16.mxu0 0
        %1412 = vmatpush1.bf16.msra.mxu0 0
        %1413 = vmatprep.subr.bf16.mxu0 0
        %1414 = vmatpush1.bf16.msra.mxu0 0
        %1415 = vmatprep.subr.bf16.mxu0 0
        %1416 = vmatpush1.bf16.msra.mxu0 0
        %1417 = vmatprep.subr.bf16.mxu0 0
        %1418 = vmatpush1.bf16.msra.mxu0 0
        %1419 = vmatprep.subr.bf16.mxu0 0
        %1420 = vmatpush1.bf16.msra.mxu0 0
        %1421 = vmatprep.subr.bf16.mxu0 0
        %1422 = vmatpush1.bf16.msra.mxu0 0
        %1423 = vmatprep.subr.bf16.mxu0 0
        %1424 = vmatpush1.bf16.msra.mxu0 0
        %1425 = vmatprep.mubr.bf16.mxu0 0
        %1426 = vmatmul.mubr.bf16.gmra.mrb[0].mxu0 %v1321
        %v1427 = vpop.f32.mrb[0].mxu0
        %v1428 = vadd.f32 %v1343, %v1427
        %v1429 = vpop.f32.mrb[0].mxu0
        %v1430 = vpop.f32.mrb[0].mxu0
        %v1431 = vadd.f32 %v1343, %v1430
        %v1432 = vpop.f32.mrb[0].mxu0
        %1433 = vdwg.mxu0
        %v1434 = vld [vmem:[%s835] sm:$0x1]
        %v1436 = vlaneseq
        %v1437 = vshrl.u32 %v1436, 7
        %v1438 = vsub.s32 0, %v1437
        %v1439 = vrot.slane %v1434, %v1438
        %v1441 = vsub.f32 %v1428, %v1439
        %v1442 = vsub.f32 %v1431, %v1439
        %v1443 = vld [vmem:[%s843] sm:$0x1]
        %v1444 = vadd.f32 %v1443, 1e-05
        %v1445 = vrsqrt.pop %v1444
        %v1447 = vlaneseq
        %v1448 = vshrl.u32 %v1447, 7
        %v1449 = vsub.s32 0, %v1448
        %v1450 = vrot.slane %v1445, %v1449
        %v1452 = vmul.f32 %v1441, %v1450
        %v1453 = vmul.f32 %v1442, %v1450
        %v1454 = vld [vmem:[%s819] sm:$0x1]
        %v1456 = vlaneseq
        %v1457 = vshrl.u32 %v1456, 7
        %v1458 = vsub.s32 0, %v1457
        %v1459 = vrot.slane %v1454, %v1458
        %v1461 = vmul.f32 %v1452, %v1459
        %v1462 = vmul.f32 %v1453, %v1459
        %v1463 = vld [vmem:[%s827] sm:$0x1]
        %v1465 = vlaneseq
        %v1466 = vshrl.u32 %v1465, 7
        %v1467 = vsub.s32 0, %v1466
        %v1468 = vrot.slane %v1463, %v1467
        %v1470 = vadd.f32 %v1461, %v1468
        %v1471 = vadd.f32 %v1462, %v1468
        %p1472 = scmp.lt.s32.totalorder %s37, 2
        // Predicated region
        $region161: #{tpu_custom_call.1} parent=87 // pred_check
          %p1473 = pneg %p1472
        $region162: #{tpu_custom_call.1} parent=87 // pred_check_branch
          %1475 = sbr.rel (%p1473) target = $region164
        $region163: #{tpu_custom_call.1} parent=87 // pred_region
          %v1476 = vmax.f32 %v1470, 0.0
          %v1477 = vmax.f32 %v1471, 0.0
          %1478 = vst [vmem:[#allocation26] sm:$0xff] %v1476
          %1479 = vst [vmem:[#allocation26 + $0x8] sm:$0xff] %v1477
        $region164: #{tpu_custom_call.1} parent=87 // pred_fallthru
          _
        %p1480 = scmp.eq.s32.totalorder %s37, 2
        // Predicated region
        $region165: #{tpu_custom_call.1} parent=87 // pred_check
          %p1481 = pneg %p1480
        $region166: #{tpu_custom_call.1} parent=87 // pred_check_branch
          %1483 = sbr.rel (%p1481) target = $region168
        $region167: #{tpu_custom_call.1} parent=87 // pred_region
          %1484 = vst [vmem:[#allocation26] sm:$0xff] %v1470
          %1485 = vst [vmem:[#allocation26 + $0x8] sm:$0xff] %v1471
          %v1486 = vld [vmem:[#allocation2] sm:$0xff]
          %v1487 = vld [vmem:[#allocation2 + $0x8] sm:$0xff]
          %v1488 = vadd.f32 %v1470, %v1486
          %v1489 = vadd.f32 %v1471, %v1487
          %v1490 = vld [vmem:[#allocation21] sm:$0xff]
          %v1492 = vsel %vm1161, %v1490, 0
          %1494 = vmatprep.subr.mxu0 0.0
          %1495 = vmatpush1.msra.mxu0 %v1488
          %1496 = vmatprep.subr.mxu0 0.0
          %1497 = vmatpush1.msra.mxu0 %v1489
          %1498 = vmatprep.subr.mxu0 0.0
          %1499 = vmatpush1.msra.mxu0 0.0
          %1500 = vmatprep.subr.mxu0 0.0
          %1501 = vmatpush1.msra.mxu0 0.0
          %1502 = vmatprep.subr.mxu0 0.0
          %1503 = vmatpush1.msra.mxu0 0.0
          %1504 = vmatprep.subr.mxu0 0.0
          %1505 = vmatpush1.msra.mxu0 0.0
          %1506 = vmatprep.subr.mxu0 0.0
          %1507 = vmatpush1.msra.mxu0 0.0
          %1508 = vmatprep.subr.mxu0 0.0
          %1509 = vmatpush1.msra.mxu0 0.0
          %1510 = vmatprep.subr.mxu0 0.0
          %1511 = vmatpush1.msra.mxu0 0.0
          %1512 = vmatprep.subr.mxu0 0.0
          %1513 = vmatpush1.msra.mxu0 0.0
          %1514 = vmatprep.subr.mxu0 0.0
          %1515 = vmatpush1.msra.mxu0 0.0
          %1516 = vmatprep.subr.mxu0 0.0
          %1517 = vmatpush1.msra.mxu0 0.0
          %1518 = vmatprep.subr.mxu0 0.0
          %1519 = vmatpush1.msra.mxu0 0.0
          %1520 = vmatprep.subr.mxu0 0.0
          %1521 = vmatpush1.msra.mxu0 0.0
          %1522 = vmatprep.subr.mxu0 0.0
          %1523 = vmatpush1.msra.mxu0 0.0
          %1524 = vmatprep.subr.mxu0 0.0
          %1525 = vmatpush1.msra.mxu0 0.0
          %1526 = vmatprep.subr.mxu0 0.0
          %1527 = vmatpush1.msra.mxu0 0.0
          %1528 = vmatprep.subr.mxu0 0.0
          %1529 = vmatpush1.msra.mxu0 0.0
          %1530 = vmatprep.subr.mxu0 0.0
          %1531 = vmatpush1.msra.mxu0 0.0
          %1532 = vmatprep.subr.mxu0 0.0
          %1533 = vmatpush1.msra.mxu0 0.0
          %1534 = vmatprep.subr.mxu0 0.0
          %1535 = vmatpush1.msra.mxu0 0.0
          %1536 = vmatprep.subr.mxu0 0.0
          %1537 = vmatpush1.msra.mxu0 0.0
          %1538 = vmatprep.subr.mxu0 0.0
          %1539 = vmatpush1.msra.mxu0 0.0
          %1540 = vmatprep.subr.mxu0 0.0
          %1541 = vmatpush1.msra.mxu0 0.0
          %1542 = vmatprep.subr.mxu0 0.0
          %1543 = vmatpush1.msra.mxu0 0.0
          %1544 = vmatprep.subr.mxu0 0.0
          %1545 = vmatpush1.msra.mxu0 0.0
          %1546 = vmatprep.subr.mxu0 0.0
          %1547 = vmatpush1.msra.mxu0 0.0
          %1548 = vmatprep.subr.mxu0 0.0
          %1549 = vmatpush1.msra.mxu0 0.0
          %1550 = vmatprep.subr.mxu0 0.0
          %1551 = vmatpush1.msra.mxu0 0.0
          %1552 = vmatprep.subr.mxu0 0.0
          %1553 = vmatpush1.msra.mxu0 0.0
          %1554 = vmatprep.subr.mxu0 0.0
          %1555 = vmatpush1.msra.mxu0 0.0
          %1556 = vmatprep.subr.mxu0 0.0
          %1557 = vmatpush1.msra.mxu0 0.0
          %1558 = vmatprep.mubr.f32.mxu0 0.0
          %1559 = vmatmul.mubr.f32.gmra.mrb[0].mxu0 %v1492
          %v1560 = vpop.f32.mrb[0].mxu0
          %v1561 = vadd.f32 0.0, %v1560
          %v1562 = vpop.f32.mrb[0].mxu0
          %1563 = vdwg.mxu0
          %v1564 = vld [vmem:[#allocation23] sm:$0xff]
          %v1565 = vld [vmem:[#allocation23 + $0x8] sm:$0xff]
          %v1566 = vld [vmem:[#allocation23 + $0x10] sm:$0xff]
          %v1567 = vld [vmem:[#allocation23 + $0x18] sm:$0xff]
          %v1568 = vld [vmem:[#allocation23 + $0x20] sm:$0xff]
          %v1569 = vld [vmem:[#allocation23 + $0x28] sm:$0xff]
          %v1570 = vld [vmem:[#allocation23 + $0x30] sm:$0xff]
          %v1571 = vld [vmem:[#allocation23 + $0x38] sm:$0xff]
          %v1572 = vld [vmem:[#allocation23 + $0x40] sm:$0xff]
          %v1573 = vld [vmem:[#allocation23 + $0x48] sm:$0xff]
          %v1574 = vld [vmem:[#allocation23 + $0x50] sm:$0xff]
          %v1575 = vld [vmem:[#allocation23 + $0x58] sm:$0xff]
          %v1576 = vld [vmem:[#allocation23 + $0x60] sm:$0xff]
          %v1577 = vld [vmem:[#allocation23 + $0x68] sm:$0xff]
          %v1578 = vld [vmem:[#allocation23 + $0x70] sm:$0xff]
          %v1579 = vld [vmem:[#allocation23 + $0x78] sm:$0xff]
          %v1580 = vld [vmem:[#allocation24] sm:$0x1]
          %v1582 = vlaneseq
          %v1583 = vshrl.u32 %v1582, 7
          %v1584 = vsub.s32 0, %v1583
          %v1585 = vrot.slane %v1580, %v1584
          %1587 = vmatprep.subr.mxu0 0.0
          %1588 = vmatpush1.msra.mxu0 %v1564
          %1589 = vmatprep.subr.mxu0 0.0
          %1590 = vmatpush1.msra.mxu0 %v1565
          %1591 = vmatprep.subr.mxu0 0.0
          %1592 = vmatpush1.msra.mxu0 %v1566
          %1593 = vmatprep.subr.mxu0 0.0
          %1594 = vmatpush1.msra.mxu0 %v1567
          %1595 = vmatprep.subr.mxu0 0.0
          %1596 = vmatpush1.msra.mxu0 %v1568
          %1597 = vmatprep.subr.mxu0 0.0
          %1598 = vmatpush1.msra.mxu0 %v1569
          %1599 = vmatprep.subr.mxu0 0.0
          %1600 = vmatpush1.msra.mxu0 %v1570
          %1601 = vmatprep.subr.mxu0 0.0
          %1602 = vmatpush1.msra.mxu0 %v1571
          %1603 = vmatprep.subr.mxu0 0.0
          %1604 = vmatpush1.msra.mxu0 %v1572
          %1605 = vmatprep.subr.mxu0 0.0
          %1606 = vmatpush1.msra.mxu0 %v1573
          %1607 = vmatprep.subr.mxu0 0.0
          %1608 = vmatpush1.msra.mxu0 %v1574
          %1609 = vmatprep.subr.mxu0 0.0
          %1610 = vmatpush1.msra.mxu0 %v1575
          %1611 = vmatprep.subr.mxu0 0.0
          %1612 = vmatpush1.msra.mxu0 %v1576
          %1613 = vmatprep.subr.mxu0 0.0
          %1614 = vmatpush1.msra.mxu0 %v1577
          %1615 = vmatprep.subr.mxu0 0.0
          %1616 = vmatpush1.msra.mxu0 %v1578
          %1617 = vmatprep.subr.mxu0 0.0
          %1618 = vmatpush1.msra.mxu0 %v1579
          %1619 = vmatprep.subr.mxu0 0.0
          %1620 = vmatpush1.msra.mxu0 0.0
          %1621 = vmatprep.subr.mxu0 0.0
          %1622 = vmatpush1.msra.mxu0 0.0
          %1623 = vmatprep.subr.mxu0 0.0
          %1624 = vmatpush1.msra.mxu0 0.0
          %1625 = vmatprep.subr.mxu0 0.0
          %1626 = vmatpush1.msra.mxu0 0.0
          %1627 = vmatprep.subr.mxu0 0.0
          %1628 = vmatpush1.msra.mxu0 0.0
          %1629 = vmatprep.subr.mxu0 0.0
          %1630 = vmatpush1.msra.mxu0 0.0
          %1631 = vmatprep.subr.mxu0 0.0
          %1632 = vmatpush1.msra.mxu0 0.0
          %1633 = vmatprep.subr.mxu0 0.0
          %1634 = vmatpush1.msra.mxu0 0.0
          %1635 = vmatprep.subr.mxu0 0.0
          %1636 = vmatpush1.msra.mxu0 0.0
          %1637 = vmatprep.subr.mxu0 0.0
          %1638 = vmatpush1.msra.mxu0 0.0
          %1639 = vmatprep.subr.mxu0 0.0
          %1640 = vmatpush1.msra.mxu0 0.0
          %1641 = vmatprep.subr.mxu0 0.0
          %1642 = vmatpush1.msra.mxu0 0.0
          %1643 = vmatprep.subr.mxu0 0.0
          %1644 = vmatpush1.msra.mxu0 0.0
          %1645 = vmatprep.subr.mxu0 0.0
          %1646 = vmatpush1.msra.mxu0 0.0
          %1647 = vmatprep.subr.mxu0 0.0
          %1648 = vmatpush1.msra.mxu0 0.0
          %1649 = vmatprep.subr.mxu0 0.0
          %1650 = vmatpush1.msra.mxu0 0.0
          %1651 = vmatprep.mubr.f32.mxu0 0.0
          %1652 = vmatmul.mubr.f32.gmra.mrb[0].mxu0 %v1561
          %v1653 = vpop.f32.mrb[0].mxu0
          %v1654 = vadd.f32 %v1585, %v1653
          %v1655 = vpop.f32.mrb[0].mxu0
          %1656 = vdwg.mxu0
          %1657 = vst [vmem:[#allocation27] sm:$0xff] %v1654
        $region168: #{tpu_custom_call.1} parent=87 // pred_fallthru
          _
        // Predicated region
        $region169: #{tpu_custom_call.1} parent=87 // pred_check
          %p1658 = pneg %p452
        $region170: #{tpu_custom_call.1} parent=87 // pred_check_branch
          %1660 = sbr.rel (%p1658) target = $region172
        $region171: #{tpu_custom_call.1} parent=87 // pred_region
          %s1662 = ssub.s32 256, 256
          %1663 = vsyncadd [#allocation5], %s1662
          %s1664 = sshll.u32 [#allocation26], 4
          %s1665 = int_to_ptr.vmem [resolvable:$true] %s1664
          %1670 = dma.vmem_to_hbm [thread:$0]  %s1665, 256, %s17, [#allocation5], 128, 128, 8
        $region172: #{tpu_custom_call.1} parent=87 // pred_fallthru
          _
        // Predicated region
        $region173: #{tpu_custom_call.1} parent=87 // pred_check
          %p1671 = pneg %p473
        $region174: #{tpu_custom_call.1} parent=87 // pred_check_branch
          %1673 = sbr.rel (%p1671) target = $region176
        $region175: #{tpu_custom_call.1} parent=87 // pred_region
          %s1675 = ssub.s32 128, 128
          %1676 = vsyncadd [#allocation28], %s1675
          %s1678 = sshll.u32 [#allocation27], 4
          %s1679 = int_to_ptr.vmem [resolvable:$true] %s1678
          %1681 = dma.vmem_to_hbm [thread:$0]  %s1679, 128, %s18, [#allocation28]
        $region176: #{tpu_custom_call.1} parent=87 // pred_fallthru
          _
        // Predicated region
        $region177: #{tpu_custom_call.1} parent=87 // pred_check
          %p1682 = pneg %p452
        $region178: #{tpu_custom_call.1} parent=87 // pred_check_branch
          %1684 = sbr.rel (%p1682) target = $region180
        $region179: #{tpu_custom_call.1} parent=87 // pred_region
          %1685 = dma.done [#allocation5], 256
        $region180: #{tpu_custom_call.1} parent=87 // pred_fallthru
          _
        // Predicated region
        $region181: #{tpu_custom_call.1} parent=87 // pred_check
          %p1686 = pneg %p473
        $region182: #{tpu_custom_call.1} parent=87 // pred_check_branch
          %1688 = sbr.rel (%p1686) target = $region184
        $region183: #{tpu_custom_call.1} parent=87 // pred_region
          %1689 = dma.done [#allocation28], 128
        $region184: #{tpu_custom_call.1} parent=87 // pred_fallthru
          _
      $region88: #{tpu_custom_call.1} parent=5 // pred_fallthru
        _
      %p1690 = scmp.le.s32.totalorder 2, %s32
      // Predicated region
      $region185: #{tpu_custom_call.1} parent=5 // pred_check
        %p1691 = pneg %p1690
      $region186: #{tpu_custom_call.1} parent=5 // pred_check_branch
        %1693 = sbr.rel (%p1691) target = $region188
      $region187: #{tpu_custom_call.1} parent=5 // pred_region
        %s1694 = ssub.s32 %s32, 2
      $region188: #{tpu_custom_call.1} parent=5 // pred_fallthru
        _
    $region6: #{tpu_custom_call.1} parent=1 // loop_footer
      %s36 = sadd.s32 1, %s32
    $region7: #{tpu_custom_call.1} parent=1 // loop_footer_branch
      %31 = sbr.rel target = $region3
    $region8: #{tpu_custom_call.1} parent=1 // loop_exit
      _
    %1695 = vsyncpa [#allocation4], 1
    %s1696 = scalar_lea.sflag [#allocation4], 1
    %1697 = vsyncpa %s1696, 1
    %1698 = vsyncpa [#allocation7], 1
    %1699 = vsyncpa [#allocation19], 1
    %1700 = vsyncpa [#allocation22], 1
    %1701 = vsyncpa [#allocation25], 1
    %1702 = vsyncpa [#allocation5], 1
    %s1703 = scalar_lea.sflag [#allocation5], 1
    %1704 = vsyncpa %s1703, 1
    %1705 = vsyncpa [#allocation28], 1

</llo_original>
